<compile_context>
chip_gen: v5e
topology: v5e:2x2
jax: 0.10.0
libtpu: 0.0.40
codegen_flags: <defaults>
</compile_context>

<pallas_src>
import functools

import jax
import jax.numpy as jnp
from jax.experimental import pallas as pl
from jax.experimental.pallas import tpu as pltpu


# ----------------------------------------------------------------------------
# Bilinear interpolation matrix (PyTorch F.interpolate, align_corners=False)
# ----------------------------------------------------------------------------
def _bilinear_matrix(in_size: int, out_size: int) -> jnp.ndarray:
    """Returns M of shape (out_size, in_size) s.t. out = M @ in (1-D bilinear)."""
    scale = in_size / out_size
    dst = jnp.arange(out_size, dtype=jnp.float32)
    src = jnp.maximum((dst + 0.5) * scale - 0.5, 0.0)
    i0 = jnp.minimum(jnp.floor(src).astype(jnp.int32), in_size - 1)
    i1 = jnp.minimum(i0 + 1, in_size - 1)
    w1 = src - i0.astype(jnp.float32)
    w0 = 1.0 - w1
    rows = jnp.arange(out_size)
    m = jnp.zeros((out_size, in_size), dtype=jnp.float32)
    m = m.at[rows, i0].add(w0)
    m = m.at[rows, i1].add(w1)
    return m


# ----------------------------------------------------------------------------
# Fused kernel: bilinear resize -> (stand-in) GAP features -> MLP head
# One grid step handles all channels of one batch element.
# ----------------------------------------------------------------------------
def _fused_kernel(x_ref, rwt_ref, rht_ref, wp_ref, w1_ref, b1_ref, w2_ref,
                  b2_ref, o_ref, *, channels, h_in, inv_area):
    # x_ref:   (1, C*Hin, Win)          rwt_ref: (Win, Wout)   rht_ref: (Hin, Hout)
    # wp_ref:  (C, F)   w1_ref: (F, F)  b1_ref: (1, F)
    # w2_ref:  (F, Npad)  b2_ref: (1, Npad)   o_ref: (1, 1, Npad)
    x = x_ref[0]            # (C*Hin, Win)
    rwt = rwt_ref[...]      # (Win, Wout)   lane-dense
    rht = rht_ref[...]      # (Hin, Hout)   lane-dense
    wp = wp_ref[...]        # (C, F)

    # Width pass for all channels at once: (C*Hin, Win) @ (Win, Wout).
    tmp = jnp.dot(x, rwt, preferred_element_type=jnp.float32)      # (C*Hin, Wout)

    feat = jnp.zeros((1, wp.shape[1]), dtype=jnp.float32)          # (1, F)
    for c in range(channels):                                      # small static unroll
        tmp_c = tmp[c * h_in:(c + 1) * h_in, :]                    # (Hin, Wout)
        # Height pass: plane = Rh @ tmp_c, with Rh supplied transposed (lane-dense).
        plane = jax.lax.dot_general(
            rht, tmp_c,
            dimension_numbers=(((0,), (0,)), ((), ())),
            preferred_element_type=jnp.float32)                    # (Hout, Wout)
        # TODO(synk): the real EmoNet backbone would consume `plane`; the
        # stand-in feature is its global average pool.
        mean_c = jnp.sum(plane, keepdims=True) * inv_area          # (1, 1)
        feat = feat + mean_c * wp[c:c + 1, :]                      # (1, F)

    h = jnp.dot(feat, w1_ref[...], preferred_element_type=jnp.float32) + b1_ref[...]
    h = jnp.maximum(h, 0.0)
    out = jnp.dot(h, w2_ref[...], preferred_element_type=jnp.float32) + b2_ref[...]
    o_ref[0] = out                                                 # (1, Npad)


# ----------------------------------------------------------------------------
# EmoNetRegressor forward
# ----------------------------------------------------------------------------
def emonet_regressor_forward(images, params, last_op=None, input_image_size=(256, 256)):
    # images: (B, C, H, W) float32 (NCHW, like PyTorch)
    B, C, Hin, Win = images.shape
    Hout, Wout = input_image_size
    outsize = params["w2"].shape[1]
    feature_size = params["wp"].shape[1]
    n_pad = ((outsize + 127) // 128) * 128                 # lane-dense head output

    # Interpolation matrices, 256-sized axis last (lane-dense in VMEM).
    rwt = _bilinear_matrix(Win, Wout).T                    # (Win, Wout)
    rht = _bilinear_matrix(Hin, Hout).T                    # (Hin, Hout)

    # Zero-pad head output weights to the lane-dense width.
    w2p = jnp.zeros((params["w2"].shape[0], n_pad), jnp.float32).at[:, :outsize].set(params["w2"])
    b2p = jnp.zeros((1, n_pad), jnp.float32).at[:, :outsize].set(params["b2"])

    x = images.reshape(B, C * Hin, Win).astype(jnp.float32)

    kernel = functools.partial(
        _fused_kernel, channels=C, h_in=Hin, inv_area=1.0 / float(Hout * Wout))

    out_padded = pl.pallas_call(
        kernel,
        out_shape=jax.ShapeDtypeStruct((B, 1, n_pad), jnp.float32),
        grid=(B,),
        in_specs=[
            pl.BlockSpec((1, C * Hin, Win), lambda b: (b, 0, 0)),       # images
            pl.BlockSpec((Win, Wout), lambda b: (0, 0)),                # Rw^T
            pl.BlockSpec((Hin, Hout), lambda b: (0, 0)),                # Rh^T
            pl.BlockSpec((C, feature_size), lambda b: (0, 0)),          # wp
            pl.BlockSpec(params["w1"].shape, lambda b: (0, 0)),         # w1
            pl.BlockSpec(params["b1"].shape, lambda b: (0, 0)),         # b1
            pl.BlockSpec((params["w2"].shape[0], n_pad), lambda b: (0, 0)),  # w2 (padded)
            pl.BlockSpec((1, n_pad), lambda b: (0, 0)),                 # b2 (padded)
        ],
        out_specs=pl.BlockSpec((1, 1, n_pad), lambda b: (b, 0, 0)),
        compiler_params=pltpu.CompilerParams(dimension_semantics=("parallel",)),
    )(x, rwt, rht, params["wp"], params["w1"], params["b1"], w2p, b2p)

    out = out_padded[:, 0, :outsize]
    if last_op is not None:
        out = last_op(out)
    return out


# ----------------------------------------------------------------------------
# Parameter construction (deterministic, synthetic)
# ----------------------------------------------------------------------------
def init_params(key, in_channels, outsize, feature_size=256, fc_size=256):
    k_wp, k_w1, k_b1, k_w2, k_b2 = jax.random.split(key, 5)
    return {
        "wp": jax.random.normal(k_wp, (in_channels, feature_size), jnp.float32) * 0.1,
        "w1": jax.random.normal(k_w1, (feature_size, fc_size), jnp.float32)
              * (1.0 / jnp.sqrt(feature_size)),
        "b1": jax.random.normal(k_b1, (1, fc_size), jnp.float32) * 0.01,
        "w2": jax.random.normal(k_w2, (fc_size, outsize), jnp.float32)
              * (1.0 / jnp.sqrt(fc_size)),
        "b2": jax.random.normal(k_b2, (1, outsize), jnp.float32) * 0.01,
    }


# ----------------------------------------------------------------------------
# Plain-JAX reference (same interpolation matrices) for a sanity check
# ----------------------------------------------------------------------------
def _reference_forward(images, params, input_image_size=(256, 256)):
    B, C, Hin, Win = images.shape
    Hout, Wout = input_image_size
    rh = _bilinear_matrix(Hin, Hout)
    rw = _bilinear_matrix(Win, Wout)
    resized = jnp.einsum("ph,bchw,qw->bcpq", rh, images, rw)
    gap = resized.reshape(B, C, -1).mean(axis=-1)
    feat = gap @ params["wp"]
    h = jnp.maximum(feat @ params["w1"] + params["b1"], 0.0)
    return h @ params["w2"] + params["b2"]


if __name__ == "__main__":
    key = jax.random.PRNGKey(0)
    k_img, k_params = jax.random.split(key)

    B, C, H, W = 2, 3, 16, 16          # small input images (NCHW)
    outsize = 10

    images = jax.random.normal(k_img, (B, C, H, W), dtype=jnp.float32)
    params = init_params(k_params, in_channels=C, outsize=outsize)

    out = emonet_regressor_forward(images, params, last_op=None)
    out = jax.block_until_ready(out)

    assert out.shape == (B, outsize), out.shape
    ref = _reference_forward(images, params)
    assert jnp.allclose(out, ref, atol=5e-3, rtol=5e-3), (out, ref)

    print("KERNEL_OK")
</pallas_src>

<mosaic_0001>
module attributes {stable_mosaic.version = 11 : i64} {
  func.func @_fused_kernel(%arg0: i32, %arg1: memref<1x48x16xf32, #tpu.memory_space<vmem>>, %arg2: memref<16x256xf32, #tpu.memory_space<vmem>>, %arg3: memref<16x256xf32, #tpu.memory_space<vmem>>, %arg4: memref<3x256xf32, #tpu.memory_space<vmem>>, %arg5: memref<256x256xf32, #tpu.memory_space<vmem>>, %arg6: memref<1x256xf32, #tpu.memory_space<vmem>>, %arg7: memref<256x128xf32, #tpu.memory_space<vmem>>, %arg8: memref<1x128xf32, #tpu.memory_space<vmem>>, %arg9: memref<1x1x128xf32, #tpu.memory_space<vmem>>) attributes {dimension_semantics = [#tpu.dimension_semantics<parallel>], iteration_bounds = array<i64: 2>, scalar_prefetch = 0 : i64, scratch_operands = 0 : i64, tpu.core_type = #tpu.core_type<tc>, window_params = [{transform_indices = @transform_0, window_bounds = array<i64: 1, 48, 16>}, {pipeline_mode = #tpu.pipeline_mode<synchronous>, transform_indices = @transform_1, window_bounds = array<i64: 16, 256>}, {pipeline_mode = #tpu.pipeline_mode<synchronous>, transform_indices = @transform_2, window_bounds = array<i64: 16, 256>}, {pipeline_mode = #tpu.pipeline_mode<synchronous>, transform_indices = @transform_3, window_bounds = array<i64: 3, 256>}, {pipeline_mode = #tpu.pipeline_mode<synchronous>, transform_indices = @transform_4, window_bounds = array<i64: 256, 256>}, {pipeline_mode = #tpu.pipeline_mode<synchronous>, transform_indices = @transform_5, window_bounds = array<i64: 1, 256>}, {pipeline_mode = #tpu.pipeline_mode<synchronous>, transform_indices = @transform_6, window_bounds = array<i64: 256, 128>}, {pipeline_mode = #tpu.pipeline_mode<synchronous>, transform_indices = @transform_7, window_bounds = array<i64: 1, 128>}, {transform_indices = @transform_8, window_bounds = array<i64: 1, 1, 128>}]} {
    %c0 = arith.constant 0 : index
    %c0_0 = arith.constant 0 : index
    %c0_1 = arith.constant 0 : index
    %0 = vector.load %arg1[%c0, %c0_0, %c0_1] : memref<1x48x16xf32, #tpu.memory_space<vmem>>, vector<1x48x16xf32>
    %1 = vector.shape_cast %0 : vector<1x48x16xf32> to vector<48x16xf32>
    %c0_2 = arith.constant 0 : index
    %c0_3 = arith.constant 0 : index
    %2 = vector.load %arg2[%c0_2, %c0_3] : memref<16x256xf32, #tpu.memory_space<vmem>>, vector<16x256xf32>
    %c0_4 = arith.constant 0 : index
    %c0_5 = arith.constant 0 : index
    %3 = vector.load %arg3[%c0_4, %c0_5] : memref<16x256xf32, #tpu.memory_space<vmem>>, vector<16x256xf32>
    %c0_6 = arith.constant 0 : index
    %c0_7 = arith.constant 0 : index
    %4 = vector.load %arg4[%c0_6, %c0_7] : memref<3x256xf32, #tpu.memory_space<vmem>>, vector<3x256xf32>
    %cst = arith.constant dense<0.000000e+00> : vector<48x256xf32>
    %5 = tpu.matmul %1, %2, %cst {dimension_numbers = #tpu.dot_dimension_numbers<[1], [0], [0], [1], [0, 0, 1, 1], [], []>} : vector<48x16xf32>, vector<16x256xf32>, vector<48x256xf32> -> vector<48x256xf32>
    %cst_8 = arith.constant 0.000000e+00 : f32
    %6 = vector.broadcast %cst_8 : f32 to vector<1x256xf32>
    %7 = vector.extract_strided_slice %5 {offsets = [0, 0], sizes = [16, 256], strides = [1, 1]} : vector<48x256xf32> to vector<16x256xf32>
    %cst_9 = arith.constant dense<0.000000e+00> : vector<256x256xf32>
    %8 = tpu.matmul %3, %7, %cst_9 {dimension_numbers = #tpu.dot_dimension_numbers<[0], [0], [1], [1], [0, 1, 1, 1], [], []>} : vector<16x256xf32>, vector<16x256xf32>, vector<256x256xf32> -> vector<256x256xf32>
    %9 = vector.shape_cast %8 : vector<256x256xf32> to vector<1x256x256xf32>
    %cst_10 = arith.constant dense<0.000000e+00> : vector<1xf32>
    %10 = vector.multi_reduction <add>, %9, %cst_10 [1, 2] : vector<1x256x256xf32> to vector<1xf32>
    %11 = vector.shape_cast %10 : vector<1xf32> to vector<1x1x1xf32>
    %12 = vector.extract %11[0, 0, 0] : f32 from vector<1x1x1xf32>
    %13 = vector.broadcast %12 : f32 to vector<1x1xf32>
    %cst_11 = arith.constant 1.52587891E-5 : f32
    %14 = vector.broadcast %cst_11 : f32 to vector<1x1xf32>
    %15 = arith.mulf %13, %14 : vector<1x1xf32>
    %16 = vector.extract_strided_slice %4 {offsets = [0, 0], sizes = [1, 256], strides = [1, 1]} : vector<3x256xf32> to vector<1x256xf32>
    %17 = vector.broadcast %15 : vector<1x1xf32> to vector<1x256xf32>
    %18 = arith.mulf %17, %16 : vector<1x256xf32>
    %19 = arith.addf %6, %18 : vector<1x256xf32>
    %20 = vector.extract_strided_slice %5 {offsets = [16, 0], sizes = [16, 256], strides = [1, 1]} : vector<48x256xf32> to vector<16x256xf32>
    %cst_12 = arith.constant dense<0.000000e+00> : vector<256x256xf32>
    %21 = tpu.matmul %3, %20, %cst_12 {dimension_numbers = #tpu.dot_dimension_numbers<[0], [0], [1], [1], [0, 1, 1, 1], [], []>} : vector<16x256xf32>, vector<16x256xf32>, vector<256x256xf32> -> vector<256x256xf32>
    %22 = vector.shape_cast %21 : vector<256x256xf32> to vector<1x256x256xf32>
    %cst_13 = arith.constant dense<0.000000e+00> : vector<1xf32>
    %23 = vector.multi_reduction <add>, %22, %cst_13 [1, 2] : vector<1x256x256xf32> to vector<1xf32>
    %24 = vector.shape_cast %23 : vector<1xf32> to vector<1x1x1xf32>
    %25 = vector.extract %24[0, 0, 0] : f32 from vector<1x1x1xf32>
    %26 = vector.broadcast %25 : f32 to vector<1x1xf32>
    %cst_14 = arith.constant 1.52587891E-5 : f32
    %27 = vector.broadcast %cst_14 : f32 to vector<1x1xf32>
    %28 = arith.mulf %26, %27 : vector<1x1xf32>
    %29 = vector.extract_strided_slice %4 {offsets = [1, 0], sizes = [1, 256], strides = [1, 1]} : vector<3x256xf32> to vector<1x256xf32>
    %30 = vector.broadcast %28 : vector<1x1xf32> to vector<1x256xf32>
    %31 = arith.mulf %30, %29 : vector<1x256xf32>
    %32 = arith.addf %19, %31 : vector<1x256xf32>
    %33 = vector.extract_strided_slice %5 {offsets = [32, 0], sizes = [16, 256], strides = [1, 1]} : vector<48x256xf32> to vector<16x256xf32>
    %cst_15 = arith.constant dense<0.000000e+00> : vector<256x256xf32>
    %34 = tpu.matmul %3, %33, %cst_15 {dimension_numbers = #tpu.dot_dimension_numbers<[0], [0], [1], [1], [0, 1, 1, 1], [], []>} : vector<16x256xf32>, vector<16x256xf32>, vector<256x256xf32> -> vector<256x256xf32>
    %35 = vector.shape_cast %34 : vector<256x256xf32> to vector<1x256x256xf32>
    %cst_16 = arith.constant dense<0.000000e+00> : vector<1xf32>
    %36 = vector.multi_reduction <add>, %35, %cst_16 [1, 2] : vector<1x256x256xf32> to vector<1xf32>
    %37 = vector.shape_cast %36 : vector<1xf32> to vector<1x1x1xf32>
    %38 = vector.extract %37[0, 0, 0] : f32 from vector<1x1x1xf32>
    %39 = vector.broadcast %38 : f32 to vector<1x1xf32>
    %cst_17 = arith.constant 1.52587891E-5 : f32
    %40 = vector.broadcast %cst_17 : f32 to vector<1x1xf32>
    %41 = arith.mulf %39, %40 : vector<1x1xf32>
    %42 = vector.extract_strided_slice %4 {offsets = [2, 0], sizes = [1, 256], strides = [1, 1]} : vector<3x256xf32> to vector<1x256xf32>
    %43 = vector.broadcast %41 : vector<1x1xf32> to vector<1x256xf32>
    %44 = arith.mulf %43, %42 : vector<1x256xf32>
    %45 = arith.addf %32, %44 : vector<1x256xf32>
    %c0_18 = arith.constant 0 : index
    %c0_19 = arith.constant 0 : index
    %46 = vector.load %arg5[%c0_18, %c0_19] : memref<256x256xf32, #tpu.memory_space<vmem>>, vector<256x256xf32>
    %cst_20 = arith.constant dense<0.000000e+00> : vector<1x256xf32>
    %47 = tpu.matmul %45, %46, %cst_20 {dimension_numbers = #tpu.dot_dimension_numbers<[1], [0], [0], [1], [0, 0, 1, 1], [], []>} : vector<1x256xf32>, vector<256x256xf32>, vector<1x256xf32> -> vector<1x256xf32>
    %c0_21 = arith.constant 0 : index
    %c0_22 = arith.constant 0 : index
    %48 = vector.load %arg6[%c0_21, %c0_22] : memref<1x256xf32, #tpu.memory_space<vmem>>, vector<1x256xf32>
    %49 = arith.addf %47, %48 : vector<1x256xf32>
    %cst_23 = arith.constant 0.000000e+00 : f32
    %50 = vector.broadcast %cst_23 : f32 to vector<1x256xf32>
    %51 = arith.maximumf %49, %50 : vector<1x256xf32>
    %c0_24 = arith.constant 0 : index
    %c0_25 = arith.constant 0 : index
    %52 = vector.load %arg7[%c0_24, %c0_25] : memref<256x128xf32, #tpu.memory_space<vmem>>, vector<256x128xf32>
    %cst_26 = arith.constant dense<0.000000e+00> : vector<1x128xf32>
    %53 = tpu.matmul %51, %52, %cst_26 {dimension_numbers = #tpu.dot_dimension_numbers<[1], [0], [0], [1], [0, 0, 1, 1], [], []>} : vector<1x256xf32>, vector<256x128xf32>, vector<1x128xf32> -> vector<1x128xf32>
    %c0_27 = arith.constant 0 : index
    %c0_28 = arith.constant 0 : index
    %54 = vector.load %arg8[%c0_27, %c0_28] : memref<1x128xf32, #tpu.memory_space<vmem>>, vector<1x128xf32>
    %55 = arith.addf %53, %54 : vector<1x128xf32>
    %c0_29 = arith.constant 0 : index
    %c0_30 = arith.constant 0 : index
    %c0_31 = arith.constant 0 : index
    %56 = vector.load %arg9[%c0_29, %c0_30, %c0_31] : memref<1x1x128xf32, #tpu.memory_space<vmem>>, vector<1x1x128xf32>
    %57 = vector.shape_cast %56 : vector<1x1x128xf32> to vector<1x128xf32>
    %58 = vector.shape_cast %55 : vector<1x128xf32> to vector<1x1x128xf32>
    tpu.vector_store %arg9[%c0_29, %c0_30, %c0_31], %58 {strides = array<i32>} : memref<1x1x128xf32, #tpu.memory_space<vmem>>, vector<1x1x128xf32>,
    return
  }
  func.func @transform_0(%arg0: i32) -> (i32, i32, i32) {
    %c0_i32 = arith.constant 0 : i32
    %c0_i32_0 = arith.constant 0 : i32
    %c0_i32_1 = arith.constant 0 : i32
    return %arg0, %c0_i32, %c0_i32_0 : i32, i32, i32
  }
  func.func @transform_1(%arg0: i32) -> (i32, i32) {
    %c0_i32 = arith.constant 0 : i32
    %c0_i32_0 = arith.constant 0 : i32
    %c0_i32_1 = arith.constant 0 : i32
    return %c0_i32, %c0_i32_0 : i32, i32
  }
  func.func @transform_2(%arg0: i32) -> (i32, i32) {
    %c0_i32 = arith.constant 0 : i32
    %c0_i32_0 = arith.constant 0 : i32
    %c0_i32_1 = arith.constant 0 : i32
    return %c0_i32, %c0_i32_0 : i32, i32
  }
  func.func @transform_3(%arg0: i32) -> (i32, i32) {
    %c0_i32 = arith.constant 0 : i32
    %c0_i32_0 = arith.constant 0 : i32
    %c0_i32_1 = arith.constant 0 : i32
    return %c0_i32, %c0_i32_0 : i32, i32
  }
  func.func @transform_4(%arg0: i32) -> (i32, i32) {
    %c0_i32 = arith.constant 0 : i32
    %c0_i32_0 = arith.constant 0 : i32
    %c0_i32_1 = arith.constant 0 : i32
    return %c0_i32, %c0_i32_0 : i32, i32
  }
  func.func @transform_5(%arg0: i32) -> (i32, i32) {
    %c0_i32 = arith.constant 0 : i32
    %c0_i32_0 = arith.constant 0 : i32
    %c0_i32_1 = arith.constant 0 : i32
    return %c0_i32, %c0_i32_0 : i32, i32
  }
  func.func @transform_6(%arg0: i32) -> (i32, i32) {
    %c0_i32 = arith.constant 0 : i32
    %c0_i32_0 = arith.constant 0 : i32
    %c0_i32_1 = arith.constant 0 : i32
    return %c0_i32, %c0_i32_0 : i32, i32
  }
  func.func @transform_7(%arg0: i32) -> (i32, i32) {
    %c0_i32 = arith.constant 0 : i32
    %c0_i32_0 = arith.constant 0 : i32
    %c0_i32_1 = arith.constant 0 : i32
    return %c0_i32, %c0_i32_0 : i32, i32
  }
  func.func @transform_8(%arg0: i32) -> (i32, i32, i32) {
    %c0_i32 = arith.constant 0 : i32
    %c0_i32_0 = arith.constant 0 : i32
    %c0_i32_1 = arith.constant 0 : i32
    return %arg0, %c0_i32, %c0_i32_0 : i32, i32, i32
  }
}

</mosaic_0001>

<llo_original>
// kernel: tpu_custom_call.1
$region0: #{tpu_custom_call.1}
  #allocation0 [shape = 'u32[]', space=smem, size = 0x4, offset = 0x4, fixed_abs, tag = 'smem constant byte address 0x4 - core index']
  #allocation1 [shape = 'u32[72,128]{1,0:T(1,128)}', space=vmem, size = 0x9000, scoped, tag = 'internal scratch']
  %s0 = inlined_call_operand.vmem [shape: f32[2,48,16], index: 0, kind: input, shape index: {}]
  %s1 = inlined_call_operand.vmem [shape: f32[16,256], index: 1, kind: input, shape index: {}]
  %s2 = inlined_call_operand.vmem [shape: f32[16,256], index: 2, kind: input, shape index: {}]
  %s3 = inlined_call_operand.vmem [shape: f32[3,256], index: 3, kind: input, shape index: {}]
  %s4 = inlined_call_operand.hbm [shape: f32[256,256], index: 4, kind: input, shape index: {}]
  %s5 = inlined_call_operand.vmem [shape: f32[1,256], index: 5, kind: input, shape index: {}]
  %s6 = inlined_call_operand.hbm [shape: f32[256,128], index: 6, kind: input, shape index: {}]
  %s7 = inlined_call_operand.vmem [shape: f32[1,128], index: 7, kind: input, shape index: {}]
  %s8 = inlined_call_operand.hbm [shape: f32[2,1,128], index: 8, kind: output, shape index: {}]
  %s9 = sld [smem:[#allocation0]]
  $region73: #{tpu_custom_call.1} parent=0
    _
  %s11 = ssub.s32 1, %s9
  %s12 = scalar_select 0, %s11, %s9
  $region1: #{tpu_custom_call.1} parent=0
    #allocation2 [shape = 'u8[262144]{0}', space=vmem, size = 0x40000, scoped, tag = 'input window, operand 4, single buffered']
    #allocation3 [shape = 's32[2]{0}', space=sflag, size = 0x8, scoped, tag = 'scoped memory for tpu_custom_call.1']
    #allocation4 [shape = 's32[2]{0}', space=sflag, size = 0x8, scoped, tag = 'scoped memory for tpu_custom_call.1']
    #allocation5 [shape = 'u8[131072]{0}', space=vmem, size = 0x20000, scoped, tag = 'input window, operand 6, single buffered']
    #allocation6 [shape = 's32[1]{0}', space=sflag, size = 0x4, scoped, tag = 'scoped memory for tpu_custom_call.1']
    #allocation7 [shape = 'u8[1024]{0}', space=vmem, size = 0x400, scoped, tag = 'output window, operand 0']
    %13 = vsyncpa [#allocation3], 0
    %14 = vsyncpa [#allocation6], 0
    %15 = vsyncpa [#allocation4], 0
    %s16 = scalar_lea.sflag [#allocation4], 1
    %17 = vsyncpa %s16, 0
    loop: start=0, step=1, limit=4
    $region2: #{tpu_custom_call.1} parent=1 // loop_pre_header
      _
    $region3: #{tpu_custom_call.1} parent=1 // loop_header
      %s19 = sphi 0, %s23
      %p20 = scmp.ge.s32.totalorder %s19, 4
      %s29 = sphi 0, %s31
      %s32 = sphi 0, %s29
      %s33 = sphi 0, %s32
      %s49 = sphi 0, %s33
      %s53 = sphi 0, %s53
      %s55 = sphi 0, %s53
      %s56 = sphi 0, %s55
      %s70 = sphi 0, %s56
      %s74 = sphi 0, %s74
      %s76 = sphi 0, %s74
      %s77 = sphi 0, %s76
      %s91 = sphi 0, %s77
      %s95 = sphi 0, %s95
      %s97 = sphi 0, %s95
      %s98 = sphi 0, %s97
      %s112 = sphi 0, %s98
      %s116 = sphi 0, %s116
      %s118 = sphi 0, %s116
      %s119 = sphi 0, %s118
      %s133 = sphi 0, %s119
      %s137 = sphi 0, %s137
      %s139 = sphi 0, %s137
      %s140 = sphi 0, %s139
      %s154 = sphi 0, %s140
      %s158 = sphi 0, %s158
      %s160 = sphi 0, %s158
      %s161 = sphi 0, %s160
      %s175 = sphi 0, %s161
      %s179 = sphi 0, %s179
      %s181 = sphi 0, %s179
      %s182 = sphi 0, %s181
      %s196 = sphi 0, %s182
      %s202 = sphi 0, %s204
      %s205 = sphi 0, %s202
      %s206 = sphi 0, %s205
      %s222 = sphi 0, %s206
    $region4: #{tpu_custom_call.1} parent=1 // loop_header_branch
      %22 = sbr.rel (%p20) target = $region8
    $region5: #{tpu_custom_call.1} parent=1 // loop_body
      %s24 = ssub.s32 %s19, 1
      %s25 = ssub.s32 %s19, 2
      %s26 = sadd.s32 %s19, 1
      %s27 = ssub.s32 %s19, %s26
      %p28 = scmp.eq.s32.totalorder %s27, 0
      %s30 = sadd.s32 %s29, 1
      %s31 = scalar_select %p28, %s29, %s30
      %p34 = pneg %p28
      %p35 = scmp.eq.s32.totalorder %s19, 1
      %p36 = por %p34, %p35
      %p37 = scmp.ne.s32.totalorder %s29, %s32
      %p38 = scmp.eq.s32.totalorder %s19, 0
      %p39 = por %p37, %p38
      %p40 = scmp.ne.s32.totalorder %s29, %s32
      %p41 = scmp.eq.s32.totalorder %s24, 1
      %p42 = por %p40, %p41
      %p43 = scmp.ne.s32.totalorder %s32, %s33
      %p44 = scmp.eq.s32.totalorder %s24, 0
      %p45 = por %p43, %p44
      %p46 = scmp.ne.s32.totalorder %s32, %s33
      %p47 = scmp.eq.s32.totalorder %s25, 1
      %p48 = por %p46, %p47
      %p50 = scmp.ne.s32.totalorder %s33, %s49
      %p51 = scmp.eq.s32.totalorder %s25, 0
      %p52 = por %p50, %p51
      %s54 = sadd.s32 %s53, 1
      %p57 = scmp.eq.s32.totalorder %s19, 1
      %p58 = scmp.ne.s32.totalorder %s53, %s55
      %p59 = scmp.eq.s32.totalorder %s19, 0
      %p60 = por %p58, %p59
      %p61 = scmp.ne.s32.totalorder %s53, %s55
      %p62 = scmp.eq.s32.totalorder %s24, 1
      %p63 = por %p61, %p62
      %p64 = scmp.ne.s32.totalorder %s55, %s56
      %p65 = scmp.eq.s32.totalorder %s24, 0
      %p66 = por %p64, %p65
      %p67 = scmp.ne.s32.totalorder %s55, %s56
      %p68 = scmp.eq.s32.totalorder %s25, 1
      %p69 = por %p67, %p68
      %p71 = scmp.ne.s32.totalorder %s56, %s70
      %p72 = scmp.eq.s32.totalorder %s25, 0
      %p73 = por %p71, %p72
      %s75 = sadd.s32 %s74, 1
      %p78 = scmp.eq.s32.totalorder %s19, 1
      %p79 = scmp.ne.s32.totalorder %s74, %s76
      %p80 = scmp.eq.s32.totalorder %s19, 0
      %p81 = por %p79, %p80
      %p82 = scmp.ne.s32.totalorder %s74, %s76
      %p83 = scmp.eq.s32.totalorder %s24, 1
      %p84 = por %p82, %p83
      %p85 = scmp.ne.s32.totalorder %s76, %s77
      %p86 = scmp.eq.s32.totalorder %s24, 0
      %p87 = por %p85, %p86
      %p88 = scmp.ne.s32.totalorder %s76, %s77
      %p89 = scmp.eq.s32.totalorder %s25, 1
      %p90 = por %p88, %p89
      %p92 = scmp.ne.s32.totalorder %s77, %s91
      %p93 = scmp.eq.s32.totalorder %s25, 0
      %p94 = por %p92, %p93
      %s96 = sadd.s32 %s95, 1
      %p99 = scmp.eq.s32.totalorder %s19, 1
      %p100 = scmp.ne.s32.totalorder %s95, %s97
      %p101 = scmp.eq.s32.totalorder %s19, 0
      %p102 = por %p100, %p101
      %p103 = scmp.ne.s32.totalorder %s95, %s97
      %p104 = scmp.eq.s32.totalorder %s24, 1
      %p105 = por %p103, %p104
      %p106 = scmp.ne.s32.totalorder %s97, %s98
      %p107 = scmp.eq.s32.totalorder %s24, 0
      %p108 = por %p106, %p107
      %p109 = scmp.ne.s32.totalorder %s97, %s98
      %p110 = scmp.eq.s32.totalorder %s25, 1
      %p111 = por %p109, %p110
      %p113 = scmp.ne.s32.totalorder %s98, %s112
      %p114 = scmp.eq.s32.totalorder %s25, 0
      %p115 = por %p113, %p114
      %s117 = sadd.s32 %s116, 1
      %p120 = scmp.eq.s32.totalorder %s19, 1
      %p121 = scmp.ne.s32.totalorder %s116, %s118
      %p122 = scmp.eq.s32.totalorder %s19, 0
      %p123 = por %p121, %p122
      %p124 = scmp.ne.s32.totalorder %s116, %s118
      %p125 = scmp.eq.s32.totalorder %s24, 1
      %p126 = por %p124, %p125
      %p127 = scmp.ne.s32.totalorder %s118, %s119
      %p128 = scmp.eq.s32.totalorder %s24, 0
      %p129 = por %p127, %p128
      %p130 = scmp.ne.s32.totalorder %s118, %s119
      %p131 = scmp.eq.s32.totalorder %s25, 1
      %p132 = por %p130, %p131
      %p134 = scmp.ne.s32.totalorder %s119, %s133
      %p135 = scmp.eq.s32.totalorder %s25, 0
      %p136 = por %p134, %p135
      %s138 = sadd.s32 %s137, 1
      %p141 = scmp.eq.s32.totalorder %s19, 1
      %p142 = scmp.ne.s32.totalorder %s137, %s139
      %p143 = scmp.eq.s32.totalorder %s19, 0
      %p144 = por %p142, %p143
      %p145 = scmp.ne.s32.totalorder %s137, %s139
      %p146 = scmp.eq.s32.totalorder %s24, 1
      %p147 = por %p145, %p146
      %p148 = scmp.ne.s32.totalorder %s139, %s140
      %p149 = scmp.eq.s32.totalorder %s24, 0
      %p150 = por %p148, %p149
      %p151 = scmp.ne.s32.totalorder %s139, %s140
      %p152 = scmp.eq.s32.totalorder %s25, 1
      %p153 = por %p151, %p152
      %p155 = scmp.ne.s32.totalorder %s140, %s154
      %p156 = scmp.eq.s32.totalorder %s25, 0
      %p157 = por %p155, %p156
      %s159 = sadd.s32 %s158, 1
      %p162 = scmp.eq.s32.totalorder %s19, 1
      %p163 = scmp.ne.s32.totalorder %s158, %s160
      %p164 = scmp.eq.s32.totalorder %s19, 0
      %p165 = por %p163, %p164
      %p166 = scmp.ne.s32.totalorder %s158, %s160
      %p167 = scmp.eq.s32.totalorder %s24, 1
      %p168 = por %p166, %p167
      %p169 = scmp.ne.s32.totalorder %s160, %s161
      %p170 = scmp.eq.s32.totalorder %s24, 0
      %p171 = por %p169, %p170
      %p172 = scmp.ne.s32.totalorder %s160, %s161
      %p173 = scmp.eq.s32.totalorder %s25, 1
      %p174 = por %p172, %p173
      %p176 = scmp.ne.s32.totalorder %s161, %s175
      %p177 = scmp.eq.s32.totalorder %s25, 0
      %p178 = por %p176, %p177
      %s180 = sadd.s32 %s179, 1
      %p183 = scmp.eq.s32.totalorder %s19, 1
      %p184 = scmp.ne.s32.totalorder %s179, %s181
      %p185 = scmp.eq.s32.totalorder %s19, 0
      %p186 = por %p184, %p185
      %p187 = scmp.ne.s32.totalorder %s179, %s181
      %p188 = scmp.eq.s32.totalorder %s24, 1
      %p189 = por %p187, %p188
      %p190 = scmp.ne.s32.totalorder %s181, %s182
      %p191 = scmp.eq.s32.totalorder %s24, 0
      %p192 = por %p190, %p191
      %p193 = scmp.ne.s32.totalorder %s181, %s182
      %p194 = scmp.eq.s32.totalorder %s25, 1
      %p195 = por %p193, %p194
      %p197 = scmp.ne.s32.totalorder %s182, %s196
      %p198 = scmp.eq.s32.totalorder %s25, 0
      %p199 = por %p197, %p198
      %s200 = ssub.s32 %s19, %s26
      %p201 = scmp.eq.s32.totalorder %s200, 0
      %s203 = sadd.s32 %s202, 1
      %s204 = scalar_select %p201, %s202, %s203
      %p207 = pneg %p201
      %p208 = scmp.eq.s32.totalorder %s19, 1
      %p209 = por %p207, %p208
      %p210 = scmp.ne.s32.totalorder %s202, %s205
      %p211 = scmp.eq.s32.totalorder %s19, 0
      %p212 = por %p210, %p211
      %p213 = scmp.ne.s32.totalorder %s202, %s205
      %p214 = scmp.eq.s32.totalorder %s24, 1
      %p215 = por %p213, %p214
      %p216 = scmp.ne.s32.totalorder %s205, %s206
      %p217 = scmp.eq.s32.totalorder %s24, 0
      %p218 = por %p216, %p217
      %p219 = scmp.ne.s32.totalorder %s205, %s206
      %p220 = scmp.eq.s32.totalorder %s25, 1
      %p221 = por %p219, %p220
      %p223 = scmp.ne.s32.totalorder %s206, %s222
      %p224 = scmp.eq.s32.totalorder %s25, 0
      %p225 = por %p223, %p224
      %p226 = scmp.le.s32.totalorder 1, %s19
      %p227 = scmp.lt.s32.totalorder %s19, 3
      %p228 = pnand %p226, %p227
      %p229 = pneg %p228
      // Predicated region
      $region9: #{tpu_custom_call.1} parent=5 // pred_check
        _
      $region10: #{tpu_custom_call.1} parent=5 // pred_check_branch
        %231 = sbr.rel (%p228) target = $region12
      $region11: #{tpu_custom_call.1} parent=5 // pred_region
        %s232 = ssub.s32 %s19, 1
        // Predicated region
        $region13: #{tpu_custom_call.1} parent=11 // pred_check
          %p233 = pneg %p66
        $region14: #{tpu_custom_call.1} parent=11 // pred_check_branch
          %235 = sbr.rel (%p233) target = $region16
        $region15: #{tpu_custom_call.1} parent=11 // pred_region
          _
        $region16: #{tpu_custom_call.1} parent=11 // pred_fallthru
          _
        // Predicated region
        $region17: #{tpu_custom_call.1} parent=11 // pred_check
          %p236 = pneg %p87
        $region18: #{tpu_custom_call.1} parent=11 // pred_check_branch
          %238 = sbr.rel (%p236) target = $region20
        $region19: #{tpu_custom_call.1} parent=11 // pred_region
          _
        $region20: #{tpu_custom_call.1} parent=11 // pred_fallthru
          _
        // Predicated region
        $region21: #{tpu_custom_call.1} parent=11 // pred_check
          %p239 = pneg %p108
        $region22: #{tpu_custom_call.1} parent=11 // pred_check_branch
          %241 = sbr.rel (%p239) target = $region24
        $region23: #{tpu_custom_call.1} parent=11 // pred_region
          _
        $region24: #{tpu_custom_call.1} parent=11 // pred_fallthru
          _
        // Predicated region
        $region25: #{tpu_custom_call.1} parent=11 // pred_check
          %p242 = pneg %p129
        $region26: #{tpu_custom_call.1} parent=11 // pred_check_branch
          %244 = sbr.rel (%p242) target = $region28
        $region27: #{tpu_custom_call.1} parent=11 // pred_region
          %246 = vsyncadd [#allocation3], 0
          %s247 = sshll.u32 %s4, 4
          %s248 = int_to_ptr.hbm [resolvable:$true] %s247
          %s249 = sshll.u32 [#allocation2], 4
          %s250 = int_to_ptr.vmem [resolvable:$true] %s249
          %255 = dma.hbm_to_vmem [thread:$0]  %s248, 8192, %s250, [#allocation3], 256, 256, 16
        $region28: #{tpu_custom_call.1} parent=11 // pred_fallthru
          _
        // Predicated region
        $region29: #{tpu_custom_call.1} parent=11 // pred_check
          %p256 = pneg %p150
        $region30: #{tpu_custom_call.1} parent=11 // pred_check_branch
          %258 = sbr.rel (%p256) target = $region32
        $region31: #{tpu_custom_call.1} parent=11 // pred_region
          _
        $region32: #{tpu_custom_call.1} parent=11 // pred_fallthru
          _
        // Predicated region
        $region33: #{tpu_custom_call.1} parent=11 // pred_check
          %p259 = pneg %p171
        $region34: #{tpu_custom_call.1} parent=11 // pred_check_branch
          %261 = sbr.rel (%p259) target = $region36
        $region35: #{tpu_custom_call.1} parent=11 // pred_region
          %263 = vsyncadd [#allocation6], 0
          %s264 = sshll.u32 %s6, 4
          %s265 = int_to_ptr.hbm [resolvable:$true] %s264
          %s266 = sshll.u32 [#allocation5], 4
          %s267 = int_to_ptr.vmem [resolvable:$true] %s266
          %272 = dma.hbm_to_vmem [thread:$0]  %s265, 4096, %s267, [#allocation6], 128, 128, 8
        $region36: #{tpu_custom_call.1} parent=11 // pred_fallthru
          _
        // Predicated region
        $region37: #{tpu_custom_call.1} parent=11 // pred_check
          %p273 = pneg %p192
        $region38: #{tpu_custom_call.1} parent=11 // pred_check_branch
          %275 = sbr.rel (%p273) target = $region40
        $region39: #{tpu_custom_call.1} parent=11 // pred_region
          _
        $region40: #{tpu_custom_call.1} parent=11 // pred_fallthru
          _
      $region12: #{tpu_custom_call.1} parent=5 // pred_fallthru
        _
      %p276 = scmp.lt.s32.totalorder %s19, 2
      // Predicated region
      $region41: #{tpu_custom_call.1} parent=5 // pred_check
        %p277 = pneg %p276
      $region42: #{tpu_custom_call.1} parent=5 // pred_check_branch
        %279 = sbr.rel (%p277) target = $region44
      $region43: #{tpu_custom_call.1} parent=5 // pred_region
        // Predicated region
        $region45: #{tpu_custom_call.1} parent=43 // pred_check
          %p280 = pneg %p39
        $region46: #{tpu_custom_call.1} parent=43 // pred_check_branch
          %282 = sbr.rel (%p280) target = $region48
        $region47: #{tpu_custom_call.1} parent=43 // pred_region
          %p283 = scmp.lt.s32.totalorder %s19, 1
          %s284 = scalar_select %p283, %s19, 1
          %s285 = smul.addr %s284, 6
          %s286 = smul.addr %s285, 8
          %s287 = scalar_lea.vmem %s0, %s286
        $region48: #{tpu_custom_call.1} parent=43 // pred_fallthru
          _
      $region44: #{tpu_custom_call.1} parent=5 // pred_fallthru
        _
      %p288 = scmp.le.s32.totalorder 1, %s19
      %p289 = scmp.lt.s32.totalorder %s19, 3
      %p290 = pnand %p288, %p289
      %p291 = pneg %p290
      // Predicated region
      $region49: #{tpu_custom_call.1} parent=5 // pred_check
        _
      $region50: #{tpu_custom_call.1} parent=5 // pred_check_branch
        %293 = sbr.rel (%p290) target = $region52
      $region51: #{tpu_custom_call.1} parent=5 // pred_region
        %s294 = ssub.s32 %s19, 1
        // Predicated region
        $region53: #{tpu_custom_call.1} parent=51 // pred_check
          %p295 = pneg %p129
        $region54: #{tpu_custom_call.1} parent=51 // pred_check_branch
          %297 = sbr.rel (%p295) target = $region56
        $region55: #{tpu_custom_call.1} parent=51 // pred_region
          %299 = dma.done [#allocation3], 8192
        $region56: #{tpu_custom_call.1} parent=51 // pred_fallthru
          _
        // Predicated region
        $region57: #{tpu_custom_call.1} parent=51 // pred_check
          %p300 = pneg %p171
        $region58: #{tpu_custom_call.1} parent=51 // pred_check_branch
          %302 = sbr.rel (%p300) target = $region60
        $region59: #{tpu_custom_call.1} parent=51 // pred_region
          %304 = dma.done [#allocation6], 4096
        $region60: #{tpu_custom_call.1} parent=51 // pred_fallthru
          _
        %p305 = scmp.lt.s32.totalorder %s24, 1
        %s306 = scalar_select %p305, %s24, 1
        %s307 = smul.addr %s306, 6
        %s308 = smul.addr %s307, 8
        %s309 = scalar_lea.vmem %s0, %s308
        %p310 = pneg %p45
        %p311 = pneg %p42
        %p312 = pneg %p66
        %p313 = pneg %p63
        %p314 = pneg %p87
        %p315 = pneg %p84
        %p316 = pneg %p108
        %p317 = pneg %p105
        %p318 = pneg %p129
        %p319 = pneg %p126
        %p320 = pneg %p150
        %p321 = pneg %p147
        %p322 = pneg %p171
        %p323 = pneg %p168
        %p324 = pneg %p192
        %p325 = pneg %p189
        %p326 = pneg %p218
        %p327 = pneg %p215
        %s328 = sand.u32 %s205, 1
        %s329 = scalar_lea.sflag [#allocation4], %s328
        %s330 = sand.u32 %s205, 1
        %s331 = scalar_lea.vmem [#allocation7], %s330
        %p332 = scmp.lt.s32.totalorder %s24, 1
        %s333 = scalar_select %p332, %s24, 1
        %s334 = smul.addr %s333, 6
        %s335 = smul.addr %s334, 8
        %s336 = scalar_lea.vmem %s0, %s335
        %v337 = vld [vmem:[%s336] sm:$0xff]
        %v338 = vld [vmem:[%s336 + $0x8] sm:$0xff]
        %v339 = vld [vmem:[%s336 + $0x10] sm:$0xff]
        %v340 = vld [vmem:[%s336 + $0x18] sm:$0xff]
        %v341 = vld [vmem:[%s336 + $0x20] sm:$0xff]
        %v342 = vld [vmem:[%s336 + $0x28] sm:$0xff]
        %v343 = vld [vmem:[%s1] sm:$0xff]
        %v344 = vld [vmem:[%s1 + $0x8] sm:$0xff]
        %v345 = vld [vmem:[%s1 + $0x10] sm:$0xff]
        %v346 = vld [vmem:[%s1 + $0x18] sm:$0xff]
        %v347 = vld [vmem:[%s2] sm:$0xff]
        %v348 = vld [vmem:[%s2 + $0x8] sm:$0xff]
        %v349 = vld [vmem:[%s2 + $0x10] sm:$0xff]
        %v350 = vld [vmem:[%s2 + $0x18] sm:$0xff]
        %v351 = vld [vmem:[%s3] sm:$0x77]
        %vm352 = vcmask 130048
        %v354 = vsel %vm352, %v337, 0
        %v357 = vsel %vm352, %v338, 0
        %v360 = vsel %vm352, %v339, 0
        %v363 = vsel %vm352, %v340, 0
        %v366 = vsel %vm352, %v341, 0
        %v369 = vsel %vm352, %v342, 0
        %371 = vmatpush.msra.mxu0 0.0
        %372 = vmatpush.msra.mxu0 0.0
        %373 = vmatpush.msra.mxu0 0.0
        %374 = vmatpush.msra.mxu0 0.0
        %375 = vmatpush.msra.mxu0 0.0
        %376 = vmatpush.msra.mxu0 0.0
        %377 = vmatpush.msra.mxu0 0.0
        %378 = vmatpush.msra.mxu0 0.0
        %379 = vmatpush.msra.mxu0 0.0
        %380 = vmatpush.msra.mxu0 0.0
        %381 = vmatpush.msra.mxu0 0.0
        %382 = vmatpush.msra.mxu0 0.0
        %383 = vmatpush.msra.mxu0 0.0
        %384 = vmatpush.msra.mxu0 0.0
        %385 = vmatpush.msra.mxu0 %v345
        %386 = vmatpush.msra.mxu0 %v343
        %387 = vmatmul.f32.gmra.mxu0 %v354
        %v388 = vpop.f32.mrf.mxu0
        %v389 = vadd.f32 0.0, %v388
        %390 = vmatmul.f32.gmra.mxu0 %v357
        %v391 = vpop.f32.mrf.mxu0
        %v392 = vadd.f32 0.0, %v391
        %393 = vmatmul.f32.gmra.mxu0 %v360
        %v394 = vpop.f32.mrf.mxu0
        %v395 = vadd.f32 0.0, %v394
        %396 = vmatmul.f32.gmra.mxu0 %v363
        %v397 = vpop.f32.mrf.mxu0
        %v398 = vadd.f32 0.0, %v397
        %399 = vmatmul.f32.gmra.mxu0 %v366
        %v400 = vpop.f32.mrf.mxu0
        %v401 = vadd.f32 0.0, %v400
        %402 = vmatmul.f32.gmra.mxu0 %v369
        %v403 = vpop.f32.mrf.mxu0
        %v404 = vadd.f32 0.0, %v403
        %405 = vdwg.mxu0
        %406 = vmatpush.msra.mxu0 0.0
        %407 = vmatpush.msra.mxu0 0.0
        %408 = vmatpush.msra.mxu0 0.0
        %409 = vmatpush.msra.mxu0 0.0
        %410 = vmatpush.msra.mxu0 0.0
        %411 = vmatpush.msra.mxu0 0.0
        %412 = vmatpush.msra.mxu0 0.0
        %413 = vmatpush.msra.mxu0 0.0
        %414 = vmatpush.msra.mxu0 0.0
        %415 = vmatpush.msra.mxu0 0.0
        %416 = vmatpush.msra.mxu0 0.0
        %417 = vmatpush.msra.mxu0 0.0
        %418 = vmatpush.msra.mxu0 0.0
        %419 = vmatpush.msra.mxu0 0.0
        %420 = vmatpush.msra.mxu0 %v346
        %421 = vmatpush.msra.mxu0 %v344
        %422 = vmatmul.f32.gmra.mxu0 %v354
        %v423 = vpop.f32.mrf.mxu0
        %v424 = vadd.f32 0.0, %v423
        %425 = vmatmul.f32.gmra.mxu0 %v357
        %v426 = vpop.f32.mrf.mxu0
        %v427 = vadd.f32 0.0, %v426
        %428 = vmatmul.f32.gmra.mxu0 %v360
        %v429 = vpop.f32.mrf.mxu0
        %v430 = vadd.f32 0.0, %v429
        %431 = vmatmul.f32.gmra.mxu0 %v363
        %v432 = vpop.f32.mrf.mxu0
        %v433 = vadd.f32 0.0, %v432
        %434 = vmatmul.f32.gmra.mxu0 %v366
        %v435 = vpop.f32.mrf.mxu0
        %v436 = vadd.f32 0.0, %v435
        %437 = vmatmul.f32.gmra.mxu0 %v369
        %v438 = vpop.f32.mrf.mxu0
        %v439 = vadd.f32 0.0, %v438
        %440 = vdwg.mxu0
        %441 = vxpose.xlu0.b32.start [1/16] %v347, 128
        %442 = vxpose.xlu0.b32.cont [2/16] %v349, 128
        %443 = vxpose.xlu0.b32.cont [3/16] 0.0, 128
        %444 = vxpose.xlu0.b32.cont [4/16] 0.0, 128
        %445 = vxpose.xlu0.b32.cont [5/16] 0.0, 128
        %446 = vxpose.xlu0.b32.cont [6/16] 0.0, 128
        %447 = vxpose.xlu0.b32.cont [7/16] 0.0, 128
        %448 = vxpose.xlu0.b32.cont [8/16] 0.0, 128
        %449 = vxpose.xlu0.b32.cont [9/16] 0.0, 128
        %450 = vxpose.xlu0.b32.cont [10/16] 0.0, 128
        %451 = vxpose.xlu0.b32.cont [11/16] 0.0, 128
        %452 = vxpose.xlu0.b32.cont [12/16] 0.0, 128
        %453 = vxpose.xlu0.b32.cont [13/16] 0.0, 128
        %454 = vxpose.xlu0.b32.cont [14/16] 0.0, 128
        %455 = vxpose.xlu0.b32.cont [15/16] 0.0, 128
        %456 = vxpose.xlu0.b32.end [16/16] 0.0, 128
        %v457 = vpop.trf.xlu0
        %v458 = vpop.trf.xlu0
        %v459 = vpop.trf.xlu0
        %v460 = vpop.trf.xlu0
        %v461 = vpop.trf.xlu0
        %v462 = vpop.trf.xlu0
        %v463 = vpop.trf.xlu0
        %v464 = vpop.trf.xlu0
        %v465 = vpop.trf.xlu0
        %v466 = vpop.trf.xlu0
        %v467 = vpop.trf.xlu0
        %v468 = vpop.trf.xlu0
        %v469 = vpop.trf.xlu0
        %v470 = vpop.trf.xlu0
        %v471 = vpop.trf.xlu0
        %v472 = vpop.trf.xlu0
        %473 = vxpose.xlu0.b32.start [1/16] %v348, 128
        %474 = vxpose.xlu0.b32.cont [2/16] %v350, 128
        %475 = vxpose.xlu0.b32.cont [3/16] 0.0, 128
        %476 = vxpose.xlu0.b32.cont [4/16] 0.0, 128
        %477 = vxpose.xlu0.b32.cont [5/16] 0.0, 128
        %478 = vxpose.xlu0.b32.cont [6/16] 0.0, 128
        %479 = vxpose.xlu0.b32.cont [7/16] 0.0, 128
        %480 = vxpose.xlu0.b32.cont [8/16] 0.0, 128
        %481 = vxpose.xlu0.b32.cont [9/16] 0.0, 128
        %482 = vxpose.xlu0.b32.cont [10/16] 0.0, 128
        %483 = vxpose.xlu0.b32.cont [11/16] 0.0, 128
        %484 = vxpose.xlu0.b32.cont [12/16] 0.0, 128
        %485 = vxpose.xlu0.b32.cont [13/16] 0.0, 128
        %486 = vxpose.xlu0.b32.cont [14/16] 0.0, 128
        %487 = vxpose.xlu0.b32.cont [15/16] 0.0, 128
        %488 = vxpose.xlu0.b32.end [16/16] 0.0, 128
        %v489 = vpop.trf.xlu0
        %v490 = vpop.trf.xlu0
        %v491 = vpop.trf.xlu0
        %v492 = vpop.trf.xlu0
        %v493 = vpop.trf.xlu0
        %v494 = vpop.trf.xlu0
        %v495 = vpop.trf.xlu0
        %v496 = vpop.trf.xlu0
        %v497 = vpop.trf.xlu0
        %v498 = vpop.trf.xlu0
        %v499 = vpop.trf.xlu0
        %v500 = vpop.trf.xlu0
        %v501 = vpop.trf.xlu0
        %v502 = vpop.trf.xlu0
        %v503 = vpop.trf.xlu0
        %v504 = vpop.trf.xlu0
        %v506 = vsel %vm352, %v457, 0
        %v509 = vsel %vm352, %v458, 0
        %v512 = vsel %vm352, %v459, 0
        %v515 = vsel %vm352, %v460, 0
        %v518 = vsel %vm352, %v461, 0
        %v521 = vsel %vm352, %v462, 0
        %v524 = vsel %vm352, %v463, 0
        %v527 = vsel %vm352, %v464, 0
        %v530 = vsel %vm352, %v465, 0
        %v533 = vsel %vm352, %v466, 0
        %v536 = vsel %vm352, %v467, 0
        %v539 = vsel %vm352, %v468, 0
        %v542 = vsel %vm352, %v469, 0
        %v545 = vsel %vm352, %v470, 0
        %v548 = vsel %vm352, %v471, 0
        %v551 = vsel %vm352, %v472, 0
        %v554 = vsel %vm352, %v489, 0
        %v557 = vsel %vm352, %v490, 0
        %v560 = vsel %vm352, %v491, 0
        %v563 = vsel %vm352, %v492, 0
        %v566 = vsel %vm352, %v493, 0
        %v569 = vsel %vm352, %v494, 0
        %v572 = vsel %vm352, %v495, 0
        %v575 = vsel %vm352, %v496, 0
        %v578 = vsel %vm352, %v497, 0
        %v581 = vsel %vm352, %v498, 0
        %v584 = vsel %vm352, %v499, 0
        %v587 = vsel %vm352, %v500, 0
        %v590 = vsel %vm352, %v501, 0
        %v593 = vsel %vm352, %v502, 0
        %v596 = vsel %vm352, %v503, 0
        %v599 = vsel %vm352, %v504, 0
        %601 = vmatpush.msra.mxu0 0.0
        %602 = vmatpush.msra.mxu0 0.0
        %603 = vmatpush.msra.mxu0 0.0
        %604 = vmatpush.msra.mxu0 0.0
        %605 = vmatpush.msra.mxu0 0.0
        %606 = vmatpush.msra.mxu0 0.0
        %607 = vmatpush.msra.mxu0 0.0
        %608 = vmatpush.msra.mxu0 0.0
        %609 = vmatpush.msra.mxu0 0.0
        %610 = vmatpush.msra.mxu0 0.0
        %611 = vmatpush.msra.mxu0 0.0
        %612 = vmatpush.msra.mxu0 0.0
        %613 = vmatpush.msra.mxu0 0.0
        %614 = vmatpush.msra.mxu0 0.0
        %615 = vmatpush.msra.mxu0 %v392
        %616 = vmatpush.msra.mxu0 %v389
        %617 = vmatmul.f32.gmra.mxu0 %v506
        %v618 = vpop.f32.mrf.mxu0
        %v619 = vadd.f32 0.0, %v618
        %620 = vmatmul.f32.gmra.mxu0 %v509
        %v621 = vpop.f32.mrf.mxu0
        %v622 = vadd.f32 0.0, %v621
        %623 = vmatmul.f32.gmra.mxu0 %v512
        %v624 = vpop.f32.mrf.mxu0
        %v625 = vadd.f32 0.0, %v624
        %626 = vmatmul.f32.gmra.mxu0 %v515
        %v627 = vpop.f32.mrf.mxu0
        %v628 = vadd.f32 0.0, %v627
        %629 = vmatmul.f32.gmra.mxu0 %v518
        %v630 = vpop.f32.mrf.mxu0
        %v631 = vadd.f32 0.0, %v630
        %632 = vmatmul.f32.gmra.mxu0 %v521
        %v633 = vpop.f32.mrf.mxu0
        %v634 = vadd.f32 0.0, %v633
        %635 = vmatmul.f32.gmra.mxu0 %v524
        %v636 = vpop.f32.mrf.mxu0
        %v637 = vadd.f32 0.0, %v636
        %638 = vmatmul.f32.gmra.mxu0 %v527
        %v639 = vpop.f32.mrf.mxu0
        %v640 = vadd.f32 0.0, %v639
        %641 = vmatmul.f32.gmra.mxu0 %v530
        %v642 = vpop.f32.mrf.mxu0
        %v643 = vadd.f32 0.0, %v642
        %644 = vmatmul.f32.gmra.mxu0 %v533
        %v645 = vpop.f32.mrf.mxu0
        %v646 = vadd.f32 0.0, %v645
        %647 = vmatmul.f32.gmra.mxu0 %v536
        %v648 = vpop.f32.mrf.mxu0
        %v649 = vadd.f32 0.0, %v648
        %650 = vmatmul.f32.gmra.mxu0 %v539
        %v651 = vpop.f32.mrf.mxu0
        %v652 = vadd.f32 0.0, %v651
        %653 = vmatmul.f32.gmra.mxu0 %v542
        %v654 = vpop.f32.mrf.mxu0
        %v655 = vadd.f32 0.0, %v654
        %656 = vmatmul.f32.gmra.mxu0 %v545
        %v657 = vpop.f32.mrf.mxu0
        %v658 = vadd.f32 0.0, %v657
        %659 = vmatmul.f32.gmra.mxu0 %v548
        %v660 = vpop.f32.mrf.mxu0
        %v661 = vadd.f32 0.0, %v660
        %662 = vmatmul.f32.gmra.mxu0 %v551
        %v663 = vpop.f32.mrf.mxu0
        %v664 = vadd.f32 0.0, %v663
        %665 = vmatmul.f32.gmra.mxu0 %v554
        %v666 = vpop.f32.mrf.mxu0
        %v667 = vadd.f32 0.0, %v666
        %668 = vmatmul.f32.gmra.mxu0 %v557
        %v669 = vpop.f32.mrf.mxu0
        %v670 = vadd.f32 0.0, %v669
        %671 = vmatmul.f32.gmra.mxu0 %v560
        %v672 = vpop.f32.mrf.mxu0
        %v673 = vadd.f32 0.0, %v672
        %674 = vmatmul.f32.gmra.mxu0 %v563
        %v675 = vpop.f32.mrf.mxu0
        %v676 = vadd.f32 0.0, %v675
        %677 = vmatmul.f32.gmra.mxu0 %v566
        %v678 = vpop.f32.mrf.mxu0
        %v679 = vadd.f32 0.0, %v678
        %680 = vmatmul.f32.gmra.mxu0 %v569
        %v681 = vpop.f32.mrf.mxu0
        %v682 = vadd.f32 0.0, %v681
        %683 = vmatmul.f32.gmra.mxu0 %v572
        %v684 = vpop.f32.mrf.mxu0
        %v685 = vadd.f32 0.0, %v684
        %686 = vmatmul.f32.gmra.mxu0 %v575
        %v687 = vpop.f32.mrf.mxu0
        %v688 = vadd.f32 0.0, %v687
        %689 = vmatmul.f32.gmra.mxu0 %v578
        %v690 = vpop.f32.mrf.mxu0
        %v691 = vadd.f32 0.0, %v690
        %692 = vmatmul.f32.gmra.mxu0 %v581
        %v693 = vpop.f32.mrf.mxu0
        %v694 = vadd.f32 0.0, %v693
        %695 = vmatmul.f32.gmra.mxu0 %v584
        %v696 = vpop.f32.mrf.mxu0
        %v697 = vadd.f32 0.0, %v696
        %698 = vmatmul.f32.gmra.mxu0 %v587
        %v699 = vpop.f32.mrf.mxu0
        %v700 = vadd.f32 0.0, %v699
        %701 = vmatmul.f32.gmra.mxu0 %v590
        %v702 = vpop.f32.mrf.mxu0
        %v703 = vadd.f32 0.0, %v702
        %704 = vmatmul.f32.gmra.mxu0 %v593
        %v705 = vpop.f32.mrf.mxu0
        %v706 = vadd.f32 0.0, %v705
        %707 = vmatmul.f32.gmra.mxu0 %v596
        %v708 = vpop.f32.mrf.mxu0
        %v709 = vadd.f32 0.0, %v708
        %710 = vmatmul.f32.gmra.mxu0 %v599
        %v711 = vpop.f32.mrf.mxu0
        %v712 = vadd.f32 0.0, %v711
        %713 = vdwg.mxu0
        %714 = vmatpush.msra.mxu0 0.0
        %715 = vmatpush.msra.mxu0 0.0
        %716 = vmatpush.msra.mxu0 0.0
        %717 = vmatpush.msra.mxu0 0.0
        %718 = vmatpush.msra.mxu0 0.0
        %719 = vmatpush.msra.mxu0 0.0
        %720 = vmatpush.msra.mxu0 0.0
        %721 = vmatpush.msra.mxu0 0.0
        %722 = vmatpush.msra.mxu0 0.0
        %723 = vmatpush.msra.mxu0 0.0
        %724 = vmatpush.msra.mxu0 0.0
        %725 = vmatpush.msra.mxu0 0.0
        %726 = vmatpush.msra.mxu0 0.0
        %727 = vmatpush.msra.mxu0 0.0
        %728 = vmatpush.msra.mxu0 %v427
        %729 = vmatpush.msra.mxu0 %v424
        %730 = vmatmul.f32.gmra.mxu0 %v506
        %v731 = vpop.f32.mrf.mxu0
        %v732 = vadd.f32 0.0, %v731
        %733 = vmatmul.f32.gmra.mxu0 %v509
        %v734 = vpop.f32.mrf.mxu0
        %v735 = vadd.f32 0.0, %v734
        %736 = vmatmul.f32.gmra.mxu0 %v512
        %v737 = vpop.f32.mrf.mxu0
        %v738 = vadd.f32 0.0, %v737
        %739 = vmatmul.f32.gmra.mxu0 %v515
        %v740 = vpop.f32.mrf.mxu0
        %v741 = vadd.f32 0.0, %v740
        %742 = vmatmul.f32.gmra.mxu0 %v518
        %v743 = vpop.f32.mrf.mxu0
        %v744 = vadd.f32 0.0, %v743
        %745 = vmatmul.f32.gmra.mxu0 %v521
        %v746 = vpop.f32.mrf.mxu0
        %v747 = vadd.f32 0.0, %v746
        %748 = vmatmul.f32.gmra.mxu0 %v524
        %v749 = vpop.f32.mrf.mxu0
        %v750 = vadd.f32 0.0, %v749
        %751 = vmatmul.f32.gmra.mxu0 %v527
        %v752 = vpop.f32.mrf.mxu0
        %v753 = vadd.f32 0.0, %v752
        %754 = vmatmul.f32.gmra.mxu0 %v530
        %v755 = vpop.f32.mrf.mxu0
        %v756 = vadd.f32 0.0, %v755
        %757 = vmatmul.f32.gmra.mxu0 %v533
        %v758 = vpop.f32.mrf.mxu0
        %v759 = vadd.f32 0.0, %v758
        %760 = vmatmul.f32.gmra.mxu0 %v536
        %v761 = vpop.f32.mrf.mxu0
        %v762 = vadd.f32 0.0, %v761
        %763 = vmatmul.f32.gmra.mxu0 %v539
        %v764 = vpop.f32.mrf.mxu0
        %v765 = vadd.f32 0.0, %v764
        %766 = vmatmul.f32.gmra.mxu0 %v542
        %v767 = vpop.f32.mrf.mxu0
        %v768 = vadd.f32 0.0, %v767
        %769 = vmatmul.f32.gmra.mxu0 %v545
        %v770 = vpop.f32.mrf.mxu0
        %v771 = vadd.f32 0.0, %v770
        %772 = vmatmul.f32.gmra.mxu0 %v548
        %v773 = vpop.f32.mrf.mxu0
        %v774 = vadd.f32 0.0, %v773
        %775 = vmatmul.f32.gmra.mxu0 %v551
        %v776 = vpop.f32.mrf.mxu0
        %v777 = vadd.f32 0.0, %v776
        %778 = vmatmul.f32.gmra.mxu0 %v554
        %v779 = vpop.f32.mrf.mxu0
        %v780 = vadd.f32 0.0, %v779
        %781 = vmatmul.f32.gmra.mxu0 %v557
        %v782 = vpop.f32.mrf.mxu0
        %v783 = vadd.f32 0.0, %v782
        %784 = vmatmul.f32.gmra.mxu0 %v560
        %v785 = vpop.f32.mrf.mxu0
        %v786 = vadd.f32 0.0, %v785
        %787 = vmatmul.f32.gmra.mxu0 %v563
        %v788 = vpop.f32.mrf.mxu0
        %v789 = vadd.f32 0.0, %v788
        %790 = vmatmul.f32.gmra.mxu0 %v566
        %v791 = vpop.f32.mrf.mxu0
        %v792 = vadd.f32 0.0, %v791
        %793 = vmatmul.f32.gmra.mxu0 %v569
        %v794 = vpop.f32.mrf.mxu0
        %v795 = vadd.f32 0.0, %v794
        %796 = vmatmul.f32.gmra.mxu0 %v572
        %v797 = vpop.f32.mrf.mxu0
        %v798 = vadd.f32 0.0, %v797
        %799 = vmatmul.f32.gmra.mxu0 %v575
        %v800 = vpop.f32.mrf.mxu0
        %v801 = vadd.f32 0.0, %v800
        %802 = vmatmul.f32.gmra.mxu0 %v578
        %v803 = vpop.f32.mrf.mxu0
        %v804 = vadd.f32 0.0, %v803
        %805 = vmatmul.f32.gmra.mxu0 %v581
        %v806 = vpop.f32.mrf.mxu0
        %v807 = vadd.f32 0.0, %v806
        %808 = vmatmul.f32.gmra.mxu0 %v584
        %v809 = vpop.f32.mrf.mxu0
        %v810 = vadd.f32 0.0, %v809
        %811 = vmatmul.f32.gmra.mxu0 %v587
        %v812 = vpop.f32.mrf.mxu0
        %v813 = vadd.f32 0.0, %v812
        %814 = vmatmul.f32.gmra.mxu0 %v590
        %v815 = vpop.f32.mrf.mxu0
        %v816 = vadd.f32 0.0, %v815
        %817 = vmatmul.f32.gmra.mxu0 %v593
        %v818 = vpop.f32.mrf.mxu0
        %v819 = vadd.f32 0.0, %v818
        %820 = vmatmul.f32.gmra.mxu0 %v596
        %v821 = vpop.f32.mrf.mxu0
        %v822 = vadd.f32 0.0, %v821
        %823 = vmatmul.f32.gmra.mxu0 %v599
        %v824 = vpop.f32.mrf.mxu0
        %v825 = vadd.f32 0.0, %v824
        %826 = vdwg.mxu0
        %v827 = vadd.f32 %v619, %v732
        %v828 = vadd.f32 %v827, %v622
        %v829 = vadd.f32 %v828, %v735
        %v830 = vadd.f32 %v829, %v625
        %v831 = vadd.f32 %v830, %v738
        %v832 = vadd.f32 %v831, %v628
        %v833 = vadd.f32 %v832, %v741
        %v834 = vadd.f32 %v833, %v631
        %v835 = vadd.f32 %v834, %v744
        %v836 = vadd.f32 %v835, %v634
        %v837 = vadd.f32 %v836, %v747
        %v838 = vadd.f32 %v837, %v637
        %v839 = vadd.f32 %v838, %v750
        %v840 = vadd.f32 %v839, %v640
        %v841 = vadd.f32 %v840, %v753
        %v842 = vadd.f32 %v841, %v643
        %v843 = vadd.f32 %v842, %v756
        %v844 = vadd.f32 %v843, %v646
        %v845 = vadd.f32 %v844, %v759
        %v846 = vadd.f32 %v845, %v649
        %v847 = vadd.f32 %v846, %v762
        %v848 = vadd.f32 %v847, %v652
        %v849 = vadd.f32 %v848, %v765
        %v850 = vadd.f32 %v849, %v655
        %v851 = vadd.f32 %v850, %v768
        %v852 = vadd.f32 %v851, %v658
        %v853 = vadd.f32 %v852, %v771
        %v854 = vadd.f32 %v853, %v661
        %v855 = vadd.f32 %v854, %v774
        %v856 = vadd.f32 %v855, %v664
        %v857 = vadd.f32 %v856, %v777
        %v858 = vadd.f32 %v857, %v667
        %v859 = vadd.f32 %v858, %v780
        %v860 = vadd.f32 %v859, %v670
        %v861 = vadd.f32 %v860, %v783
        %v862 = vadd.f32 %v861, %v673
        %v863 = vadd.f32 %v862, %v786
        %v864 = vadd.f32 %v863, %v676
        %v865 = vadd.f32 %v864, %v789
        %v866 = vadd.f32 %v865, %v679
        %v867 = vadd.f32 %v866, %v792
        %v868 = vadd.f32 %v867, %v682
        %v869 = vadd.f32 %v868, %v795
        %v870 = vadd.f32 %v869, %v685
        %v871 = vadd.f32 %v870, %v798
        %v872 = vadd.f32 %v871, %v688
        %v873 = vadd.f32 %v872, %v801
        %v874 = vadd.f32 %v873, %v691
        %v875 = vadd.f32 %v874, %v804
        %v876 = vadd.f32 %v875, %v694
        %v877 = vadd.f32 %v876, %v807
        %v878 = vadd.f32 %v877, %v697
        %v879 = vadd.f32 %v878, %v810
        %v880 = vadd.f32 %v879, %v700
        %v881 = vadd.f32 %v880, %v813
        %v882 = vadd.f32 %v881, %v703
        %v883 = vadd.f32 %v882, %v816
        %v884 = vadd.f32 %v883, %v706
        %v885 = vadd.f32 %v884, %v819
        %v886 = vadd.f32 %v885, %v709
        %v887 = vadd.f32 %v886, %v822
        %v888 = vadd.f32 %v887, %v712
        %v889 = vadd.f32 %v888, %v825
        %890 = vadd.xlane.f32.xlu0 %v889
        %v891 = vpop.xlane.xlu0 %890
        %v892 = vrot.slane %v891, 4
        %v893 = vadd.f32 %v891, %v892
        %v894 = vrot.slane %v893, 2
        %v895 = vadd.f32 %v893, %v894
        %v896 = vrot.slane %v895, 1
        %v897 = vadd.f32 %v895, %v896
        %s898 = vtos %v897
        %v899 = vstv %s898
        %v900 = vmul.f32 %v899, 1.5258789e-05
        %v901 = vmul.f32 %v900, %v351
        %v902 = vadd.f32 %v901, 0.0
        %903 = vmatpush.msra.mxu0 0.0
        %904 = vmatpush.msra.mxu0 0.0
        %905 = vmatpush.msra.mxu0 0.0
        %906 = vmatpush.msra.mxu0 0.0
        %907 = vmatpush.msra.mxu0 0.0
        %908 = vmatpush.msra.mxu0 0.0
        %909 = vmatpush.msra.mxu0 0.0
        %910 = vmatpush.msra.mxu0 0.0
        %911 = vmatpush.msra.mxu0 0.0
        %912 = vmatpush.msra.mxu0 0.0
        %913 = vmatpush.msra.mxu0 0.0
        %914 = vmatpush.msra.mxu0 0.0
        %915 = vmatpush.msra.mxu0 0.0
        %916 = vmatpush.msra.mxu0 0.0
        %917 = vmatpush.msra.mxu0 %v398
        %918 = vmatpush.msra.mxu0 %v395
        %919 = vmatmul.f32.gmra.mxu0 %v506
        %v920 = vpop.f32.mrf.mxu0
        %v921 = vadd.f32 0.0, %v920
        %922 = vmatmul.f32.gmra.mxu0 %v509
        %v923 = vpop.f32.mrf.mxu0
        %v924 = vadd.f32 0.0, %v923
        %925 = vmatmul.f32.gmra.mxu0 %v512
        %v926 = vpop.f32.mrf.mxu0
        %v927 = vadd.f32 0.0, %v926
        %928 = vmatmul.f32.gmra.mxu0 %v515
        %v929 = vpop.f32.mrf.mxu0
        %v930 = vadd.f32 0.0, %v929
        %931 = vmatmul.f32.gmra.mxu0 %v518
        %v932 = vpop.f32.mrf.mxu0
        %v933 = vadd.f32 0.0, %v932
        %934 = vmatmul.f32.gmra.mxu0 %v521
        %v935 = vpop.f32.mrf.mxu0
        %v936 = vadd.f32 0.0, %v935
        %937 = vmatmul.f32.gmra.mxu0 %v524
        %v938 = vpop.f32.mrf.mxu0
        %v939 = vadd.f32 0.0, %v938
        %940 = vmatmul.f32.gmra.mxu0 %v527
        %v941 = vpop.f32.mrf.mxu0
        %v942 = vadd.f32 0.0, %v941
        %943 = vmatmul.f32.gmra.mxu0 %v530
        %v944 = vpop.f32.mrf.mxu0
        %v945 = vadd.f32 0.0, %v944
        %946 = vmatmul.f32.gmra.mxu0 %v533
        %v947 = vpop.f32.mrf.mxu0
        %v948 = vadd.f32 0.0, %v947
        %949 = vmatmul.f32.gmra.mxu0 %v536
        %v950 = vpop.f32.mrf.mxu0
        %v951 = vadd.f32 0.0, %v950
        %952 = vmatmul.f32.gmra.mxu0 %v539
        %v953 = vpop.f32.mrf.mxu0
        %v954 = vadd.f32 0.0, %v953
        %955 = vmatmul.f32.gmra.mxu0 %v542
        %v956 = vpop.f32.mrf.mxu0
        %v957 = vadd.f32 0.0, %v956
        %958 = vmatmul.f32.gmra.mxu0 %v545
        %v959 = vpop.f32.mrf.mxu0
        %v960 = vadd.f32 0.0, %v959
        %961 = vmatmul.f32.gmra.mxu0 %v548
        %v962 = vpop.f32.mrf.mxu0
        %v963 = vadd.f32 0.0, %v962
        %964 = vmatmul.f32.gmra.mxu0 %v551
        %v965 = vpop.f32.mrf.mxu0
        %v966 = vadd.f32 0.0, %v965
        %967 = vmatmul.f32.gmra.mxu0 %v554
        %v968 = vpop.f32.mrf.mxu0
        %v969 = vadd.f32 0.0, %v968
        %970 = vmatmul.f32.gmra.mxu0 %v557
        %v971 = vpop.f32.mrf.mxu0
        %v972 = vadd.f32 0.0, %v971
        %973 = vmatmul.f32.gmra.mxu0 %v560
        %v974 = vpop.f32.mrf.mxu0
        %v975 = vadd.f32 0.0, %v974
        %976 = vmatmul.f32.gmra.mxu0 %v563
        %v977 = vpop.f32.mrf.mxu0
        %v978 = vadd.f32 0.0, %v977
        %979 = vmatmul.f32.gmra.mxu0 %v566
        %v980 = vpop.f32.mrf.mxu0
        %v981 = vadd.f32 0.0, %v980
        %982 = vmatmul.f32.gmra.mxu0 %v569
        %v983 = vpop.f32.mrf.mxu0
        %v984 = vadd.f32 0.0, %v983
        %985 = vmatmul.f32.gmra.mxu0 %v572
        %v986 = vpop.f32.mrf.mxu0
        %v987 = vadd.f32 0.0, %v986
        %988 = vmatmul.f32.gmra.mxu0 %v575
        %v989 = vpop.f32.mrf.mxu0
        %v990 = vadd.f32 0.0, %v989
        %991 = vmatmul.f32.gmra.mxu0 %v578
        %v992 = vpop.f32.mrf.mxu0
        %v993 = vadd.f32 0.0, %v992
        %994 = vmatmul.f32.gmra.mxu0 %v581
        %v995 = vpop.f32.mrf.mxu0
        %v996 = vadd.f32 0.0, %v995
        %997 = vmatmul.f32.gmra.mxu0 %v584
        %v998 = vpop.f32.mrf.mxu0
        %v999 = vadd.f32 0.0, %v998
        %1000 = vmatmul.f32.gmra.mxu0 %v587
        %v1001 = vpop.f32.mrf.mxu0
        %v1002 = vadd.f32 0.0, %v1001
        %1003 = vmatmul.f32.gmra.mxu0 %v590
        %v1004 = vpop.f32.mrf.mxu0
        %v1005 = vadd.f32 0.0, %v1004
        %1006 = vmatmul.f32.gmra.mxu0 %v593
        %v1007 = vpop.f32.mrf.mxu0
        %v1008 = vadd.f32 0.0, %v1007
        %1009 = vmatmul.f32.gmra.mxu0 %v596
        %v1010 = vpop.f32.mrf.mxu0
        %v1011 = vadd.f32 0.0, %v1010
        %1012 = vmatmul.f32.gmra.mxu0 %v599
        %v1013 = vpop.f32.mrf.mxu0
        %v1014 = vadd.f32 0.0, %v1013
        %1015 = vdwg.mxu0
        %1016 = vmatpush.msra.mxu0 0.0
        %1017 = vmatpush.msra.mxu0 0.0
        %1018 = vmatpush.msra.mxu0 0.0
        %1019 = vmatpush.msra.mxu0 0.0
        %1020 = vmatpush.msra.mxu0 0.0
        %1021 = vmatpush.msra.mxu0 0.0
        %1022 = vmatpush.msra.mxu0 0.0
        %1023 = vmatpush.msra.mxu0 0.0
        %1024 = vmatpush.msra.mxu0 0.0
        %1025 = vmatpush.msra.mxu0 0.0
        %1026 = vmatpush.msra.mxu0 0.0
        %1027 = vmatpush.msra.mxu0 0.0
        %1028 = vmatpush.msra.mxu0 0.0
        %1029 = vmatpush.msra.mxu0 0.0
        %1030 = vmatpush.msra.mxu0 %v433
        %1031 = vmatpush.msra.mxu0 %v430
        %1032 = vmatmul.f32.gmra.mxu0 %v506
        %v1033 = vpop.f32.mrf.mxu0
        %v1034 = vadd.f32 0.0, %v1033
        %1035 = vmatmul.f32.gmra.mxu0 %v509
        %v1036 = vpop.f32.mrf.mxu0
        %v1037 = vadd.f32 0.0, %v1036
        %1038 = vmatmul.f32.gmra.mxu0 %v512
        %v1039 = vpop.f32.mrf.mxu0
        %v1040 = vadd.f32 0.0, %v1039
        %1041 = vmatmul.f32.gmra.mxu0 %v515
        %v1042 = vpop.f32.mrf.mxu0
        %v1043 = vadd.f32 0.0, %v1042
        %1044 = vmatmul.f32.gmra.mxu0 %v518
        %v1045 = vpop.f32.mrf.mxu0
        %v1046 = vadd.f32 0.0, %v1045
        %1047 = vmatmul.f32.gmra.mxu0 %v521
        %v1048 = vpop.f32.mrf.mxu0
        %v1049 = vadd.f32 0.0, %v1048
        %1050 = vmatmul.f32.gmra.mxu0 %v524
        %v1051 = vpop.f32.mrf.mxu0
        %v1052 = vadd.f32 0.0, %v1051
        %1053 = vmatmul.f32.gmra.mxu0 %v527
        %v1054 = vpop.f32.mrf.mxu0
        %v1055 = vadd.f32 0.0, %v1054
        %1056 = vmatmul.f32.gmra.mxu0 %v530
        %v1057 = vpop.f32.mrf.mxu0
        %v1058 = vadd.f32 0.0, %v1057
        %1059 = vmatmul.f32.gmra.mxu0 %v533
        %v1060 = vpop.f32.mrf.mxu0
        %v1061 = vadd.f32 0.0, %v1060
        %1062 = vmatmul.f32.gmra.mxu0 %v536
        %v1063 = vpop.f32.mrf.mxu0
        %v1064 = vadd.f32 0.0, %v1063
        %1065 = vmatmul.f32.gmra.mxu0 %v539
        %v1066 = vpop.f32.mrf.mxu0
        %v1067 = vadd.f32 0.0, %v1066
        %1068 = vmatmul.f32.gmra.mxu0 %v542
        %v1069 = vpop.f32.mrf.mxu0
        %v1070 = vadd.f32 0.0, %v1069
        %1071 = vmatmul.f32.gmra.mxu0 %v545
        %v1072 = vpop.f32.mrf.mxu0
        %v1073 = vadd.f32 0.0, %v1072
        %1074 = vmatmul.f32.gmra.mxu0 %v548
        %v1075 = vpop.f32.mrf.mxu0
        %v1076 = vadd.f32 0.0, %v1075
        %1077 = vmatmul.f32.gmra.mxu0 %v551
        %v1078 = vpop.f32.mrf.mxu0
        %v1079 = vadd.f32 0.0, %v1078
        %1080 = vmatmul.f32.gmra.mxu0 %v554
        %v1081 = vpop.f32.mrf.mxu0
        %v1082 = vadd.f32 0.0, %v1081
        %1083 = vmatmul.f32.gmra.mxu0 %v557
        %v1084 = vpop.f32.mrf.mxu0
        %v1085 = vadd.f32 0.0, %v1084
        %1086 = vmatmul.f32.gmra.mxu0 %v560
        %v1087 = vpop.f32.mrf.mxu0
        %v1088 = vadd.f32 0.0, %v1087
        %1089 = vmatmul.f32.gmra.mxu0 %v563
        %v1090 = vpop.f32.mrf.mxu0
        %v1091 = vadd.f32 0.0, %v1090
        %1092 = vmatmul.f32.gmra.mxu0 %v566
        %v1093 = vpop.f32.mrf.mxu0
        %v1094 = vadd.f32 0.0, %v1093
        %1095 = vmatmul.f32.gmra.mxu0 %v569
        %v1096 = vpop.f32.mrf.mxu0
        %v1097 = vadd.f32 0.0, %v1096
        %1098 = vmatmul.f32.gmra.mxu0 %v572
        %v1099 = vpop.f32.mrf.mxu0
        %v1100 = vadd.f32 0.0, %v1099
        %1101 = vmatmul.f32.gmra.mxu0 %v575
        %v1102 = vpop.f32.mrf.mxu0
        %v1103 = vadd.f32 0.0, %v1102
        %1104 = vmatmul.f32.gmra.mxu0 %v578
        %v1105 = vpop.f32.mrf.mxu0
        %v1106 = vadd.f32 0.0, %v1105
        %1107 = vmatmul.f32.gmra.mxu0 %v581
        %v1108 = vpop.f32.mrf.mxu0
        %v1109 = vadd.f32 0.0, %v1108
        %1110 = vmatmul.f32.gmra.mxu0 %v584
        %v1111 = vpop.f32.mrf.mxu0
        %v1112 = vadd.f32 0.0, %v1111
        %1113 = vmatmul.f32.gmra.mxu0 %v587
        %v1114 = vpop.f32.mrf.mxu0
        %v1115 = vadd.f32 0.0, %v1114
        %1116 = vmatmul.f32.gmra.mxu0 %v590
        %v1117 = vpop.f32.mrf.mxu0
        %v1118 = vadd.f32 0.0, %v1117
        %1119 = vmatmul.f32.gmra.mxu0 %v593
        %v1120 = vpop.f32.mrf.mxu0
        %v1121 = vadd.f32 0.0, %v1120
        %1122 = vmatmul.f32.gmra.mxu0 %v596
        %v1123 = vpop.f32.mrf.mxu0
        %v1124 = vadd.f32 0.0, %v1123
        %1125 = vmatmul.f32.gmra.mxu0 %v599
        %v1126 = vpop.f32.mrf.mxu0
        %v1127 = vadd.f32 0.0, %v1126
        %1128 = vdwg.mxu0
        %v1129 = vadd.f32 %v921, %v1034
        %v1130 = vadd.f32 %v1129, %v924
        %v1131 = vadd.f32 %v1130, %v1037
        %v1132 = vadd.f32 %v1131, %v927
        %v1133 = vadd.f32 %v1132, %v1040
        %v1134 = vadd.f32 %v1133, %v930
        %v1135 = vadd.f32 %v1134, %v1043
        %v1136 = vadd.f32 %v1135, %v933
        %v1137 = vadd.f32 %v1136, %v1046
        %v1138 = vadd.f32 %v1137, %v936
        %v1139 = vadd.f32 %v1138, %v1049
        %v1140 = vadd.f32 %v1139, %v939
        %v1141 = vadd.f32 %v1140, %v1052
        %v1142 = vadd.f32 %v1141, %v942
        %v1143 = vadd.f32 %v1142, %v1055
        %v1144 = vadd.f32 %v1143, %v945
        %v1145 = vadd.f32 %v1144, %v1058
        %v1146 = vadd.f32 %v1145, %v948
        %v1147 = vadd.f32 %v1146, %v1061
        %v1148 = vadd.f32 %v1147, %v951
        %v1149 = vadd.f32 %v1148, %v1064
        %v1150 = vadd.f32 %v1149, %v954
        %v1151 = vadd.f32 %v1150, %v1067
        %v1152 = vadd.f32 %v1151, %v957
        %v1153 = vadd.f32 %v1152, %v1070
        %v1154 = vadd.f32 %v1153, %v960
        %v1155 = vadd.f32 %v1154, %v1073
        %v1156 = vadd.f32 %v1155, %v963
        %v1157 = vadd.f32 %v1156, %v1076
        %v1158 = vadd.f32 %v1157, %v966
        %v1159 = vadd.f32 %v1158, %v1079
        %v1160 = vadd.f32 %v1159, %v969
        %v1161 = vadd.f32 %v1160, %v1082
        %v1162 = vadd.f32 %v1161, %v972
        %v1163 = vadd.f32 %v1162, %v1085
        %v1164 = vadd.f32 %v1163, %v975
        %v1165 = vadd.f32 %v1164, %v1088
        %v1166 = vadd.f32 %v1165, %v978
        %v1167 = vadd.f32 %v1166, %v1091
        %v1168 = vadd.f32 %v1167, %v981
        %v1169 = vadd.f32 %v1168, %v1094
        %v1170 = vadd.f32 %v1169, %v984
        %v1171 = vadd.f32 %v1170, %v1097
        %v1172 = vadd.f32 %v1171, %v987
        %v1173 = vadd.f32 %v1172, %v1100
        %v1174 = vadd.f32 %v1173, %v990
        %v1175 = vadd.f32 %v1174, %v1103
        %v1176 = vadd.f32 %v1175, %v993
        %v1177 = vadd.f32 %v1176, %v1106
        %v1178 = vadd.f32 %v1177, %v996
        %v1179 = vadd.f32 %v1178, %v1109
        %v1180 = vadd.f32 %v1179, %v999
        %v1181 = vadd.f32 %v1180, %v1112
        %v1182 = vadd.f32 %v1181, %v1002
        %v1183 = vadd.f32 %v1182, %v1115
        %v1184 = vadd.f32 %v1183, %v1005
        %v1185 = vadd.f32 %v1184, %v1118
        %v1186 = vadd.f32 %v1185, %v1008
        %v1187 = vadd.f32 %v1186, %v1121
        %v1188 = vadd.f32 %v1187, %v1011
        %v1189 = vadd.f32 %v1188, %v1124
        %v1190 = vadd.f32 %v1189, %v1014
        %v1191 = vadd.f32 %v1190, %v1127
        %1192 = vadd.xlane.f32.xlu0 %v1191
        %v1193 = vpop.xlane.xlu0 %1192
        %v1194 = vrot.slane %v1193, 4
        %v1195 = vadd.f32 %v1193, %v1194
        %v1196 = vrot.slane %v1195, 2
        %v1197 = vadd.f32 %v1195, %v1196
        %v1198 = vrot.slane %v1197, 1
        %v1199 = vadd.f32 %v1197, %v1198
        %s1200 = vtos %v1199
        %v1201 = vstv %s1200
        %v1202 = vmul.f32 %v1201, 1.5258789e-05
        %v1203 = vmul.f32 %v1202, %v351
        %v1205 = vrot.slane %v1203, 5
        %v1206 = vrot.slane %v1205, 4
        %v1208 = vadd.f32 %v902, %v1206
        %1209 = vmatpush.msra.mxu0 0.0
        %1210 = vmatpush.msra.mxu0 0.0
        %1211 = vmatpush.msra.mxu0 0.0
        %1212 = vmatpush.msra.mxu0 0.0
        %1213 = vmatpush.msra.mxu0 0.0
        %1214 = vmatpush.msra.mxu0 0.0
        %1215 = vmatpush.msra.mxu0 0.0
        %1216 = vmatpush.msra.mxu0 0.0
        %1217 = vmatpush.msra.mxu0 0.0
        %1218 = vmatpush.msra.mxu0 0.0
        %1219 = vmatpush.msra.mxu0 0.0
        %1220 = vmatpush.msra.mxu0 0.0
        %1221 = vmatpush.msra.mxu0 0.0
        %1222 = vmatpush.msra.mxu0 0.0
        %1223 = vmatpush.msra.mxu0 %v404
        %1224 = vmatpush.msra.mxu0 %v401
        %1225 = vmatmul.f32.gmra.mxu0 %v506
        %v1226 = vpop.f32.mrf.mxu0
        %v1227 = vadd.f32 0.0, %v1226
        %1228 = vmatmul.f32.gmra.mxu0 %v509
        %v1229 = vpop.f32.mrf.mxu0
        %v1230 = vadd.f32 0.0, %v1229
        %1231 = vmatmul.f32.gmra.mxu0 %v512
        %v1232 = vpop.f32.mrf.mxu0
        %v1233 = vadd.f32 0.0, %v1232
        %1234 = vmatmul.f32.gmra.mxu0 %v515
        %v1235 = vpop.f32.mrf.mxu0
        %v1236 = vadd.f32 0.0, %v1235
        %1237 = vmatmul.f32.gmra.mxu0 %v518
        %v1238 = vpop.f32.mrf.mxu0
        %v1239 = vadd.f32 0.0, %v1238
        %1240 = vmatmul.f32.gmra.mxu0 %v521
        %v1241 = vpop.f32.mrf.mxu0
        %v1242 = vadd.f32 0.0, %v1241
        %1243 = vmatmul.f32.gmra.mxu0 %v524
        %v1244 = vpop.f32.mrf.mxu0
        %v1245 = vadd.f32 0.0, %v1244
        %1246 = vmatmul.f32.gmra.mxu0 %v527
        %v1247 = vpop.f32.mrf.mxu0
        %v1248 = vadd.f32 0.0, %v1247
        %1249 = vmatmul.f32.gmra.mxu0 %v530
        %v1250 = vpop.f32.mrf.mxu0
        %v1251 = vadd.f32 0.0, %v1250
        %1252 = vmatmul.f32.gmra.mxu0 %v533
        %v1253 = vpop.f32.mrf.mxu0
        %v1254 = vadd.f32 0.0, %v1253
        %1255 = vmatmul.f32.gmra.mxu0 %v536
        %v1256 = vpop.f32.mrf.mxu0
        %v1257 = vadd.f32 0.0, %v1256
        %1258 = vmatmul.f32.gmra.mxu0 %v539
        %v1259 = vpop.f32.mrf.mxu0
        %v1260 = vadd.f32 0.0, %v1259
        %1261 = vmatmul.f32.gmra.mxu0 %v542
        %v1262 = vpop.f32.mrf.mxu0
        %v1263 = vadd.f32 0.0, %v1262
        %1264 = vmatmul.f32.gmra.mxu0 %v545
        %v1265 = vpop.f32.mrf.mxu0
        %v1266 = vadd.f32 0.0, %v1265
        %1267 = vmatmul.f32.gmra.mxu0 %v548
        %v1268 = vpop.f32.mrf.mxu0
        %v1269 = vadd.f32 0.0, %v1268
        %1270 = vmatmul.f32.gmra.mxu0 %v551
        %v1271 = vpop.f32.mrf.mxu0
        %v1272 = vadd.f32 0.0, %v1271
        %1273 = vmatmul.f32.gmra.mxu0 %v554
        %v1274 = vpop.f32.mrf.mxu0
        %v1275 = vadd.f32 0.0, %v1274
        %1276 = vmatmul.f32.gmra.mxu0 %v557
        %v1277 = vpop.f32.mrf.mxu0
        %v1278 = vadd.f32 0.0, %v1277
        %1279 = vmatmul.f32.gmra.mxu0 %v560
        %v1280 = vpop.f32.mrf.mxu0
        %v1281 = vadd.f32 0.0, %v1280
        %1282 = vmatmul.f32.gmra.mxu0 %v563
        %v1283 = vpop.f32.mrf.mxu0
        %v1284 = vadd.f32 0.0, %v1283
        %1285 = vmatmul.f32.gmra.mxu0 %v566
        %v1286 = vpop.f32.mrf.mxu0
        %v1287 = vadd.f32 0.0, %v1286
        %1288 = vmatmul.f32.gmra.mxu0 %v569
        %v1289 = vpop.f32.mrf.mxu0
        %v1290 = vadd.f32 0.0, %v1289
        %1291 = vmatmul.f32.gmra.mxu0 %v572
        %v1292 = vpop.f32.mrf.mxu0
        %v1293 = vadd.f32 0.0, %v1292
        %1294 = vmatmul.f32.gmra.mxu0 %v575
        %v1295 = vpop.f32.mrf.mxu0
        %v1296 = vadd.f32 0.0, %v1295
        %1297 = vmatmul.f32.gmra.mxu0 %v578
        %v1298 = vpop.f32.mrf.mxu0
        %v1299 = vadd.f32 0.0, %v1298
        %1300 = vmatmul.f32.gmra.mxu0 %v581
        %v1301 = vpop.f32.mrf.mxu0
        %v1302 = vadd.f32 0.0, %v1301
        %1303 = vmatmul.f32.gmra.mxu0 %v584
        %v1304 = vpop.f32.mrf.mxu0
        %v1305 = vadd.f32 0.0, %v1304
        %1306 = vmatmul.f32.gmra.mxu0 %v587
        %v1307 = vpop.f32.mrf.mxu0
        %v1308 = vadd.f32 0.0, %v1307
        %1309 = vmatmul.f32.gmra.mxu0 %v590
        %v1310 = vpop.f32.mrf.mxu0
        %v1311 = vadd.f32 0.0, %v1310
        %1312 = vmatmul.f32.gmra.mxu0 %v593
        %v1313 = vpop.f32.mrf.mxu0
        %v1314 = vadd.f32 0.0, %v1313
        %1315 = vmatmul.f32.gmra.mxu0 %v596
        %v1316 = vpop.f32.mrf.mxu0
        %v1317 = vadd.f32 0.0, %v1316
        %1318 = vmatmul.f32.gmra.mxu0 %v599
        %v1319 = vpop.f32.mrf.mxu0
        %v1320 = vadd.f32 0.0, %v1319
        %1321 = vdwg.mxu0
        %1322 = vmatpush.msra.mxu0 0.0
        %1323 = vmatpush.msra.mxu0 0.0
        %1324 = vmatpush.msra.mxu0 0.0
        %1325 = vmatpush.msra.mxu0 0.0
        %1326 = vmatpush.msra.mxu0 0.0
        %1327 = vmatpush.msra.mxu0 0.0
        %1328 = vmatpush.msra.mxu0 0.0
        %1329 = vmatpush.msra.mxu0 0.0
        %1330 = vmatpush.msra.mxu0 0.0
        %1331 = vmatpush.msra.mxu0 0.0
        %1332 = vmatpush.msra.mxu0 0.0
        %1333 = vmatpush.msra.mxu0 0.0
        %1334 = vmatpush.msra.mxu0 0.0
        %1335 = vmatpush.msra.mxu0 0.0
        %1336 = vmatpush.msra.mxu0 %v439
        %1337 = vmatpush.msra.mxu0 %v436
        %1338 = vmatmul.f32.gmra.mxu0 %v506
        %v1339 = vpop.f32.mrf.mxu0
        %v1340 = vadd.f32 0.0, %v1339
        %1341 = vmatmul.f32.gmra.mxu0 %v509
        %v1342 = vpop.f32.mrf.mxu0
        %v1343 = vadd.f32 0.0, %v1342
        %1344 = vmatmul.f32.gmra.mxu0 %v512
        %v1345 = vpop.f32.mrf.mxu0
        %v1346 = vadd.f32 0.0, %v1345
        %1347 = vmatmul.f32.gmra.mxu0 %v515
        %v1348 = vpop.f32.mrf.mxu0
        %v1349 = vadd.f32 0.0, %v1348
        %1350 = vmatmul.f32.gmra.mxu0 %v518
        %v1351 = vpop.f32.mrf.mxu0
        %v1352 = vadd.f32 0.0, %v1351
        %1353 = vmatmul.f32.gmra.mxu0 %v521
        %v1354 = vpop.f32.mrf.mxu0
        %v1355 = vadd.f32 0.0, %v1354
        %1356 = vmatmul.f32.gmra.mxu0 %v524
        %v1357 = vpop.f32.mrf.mxu0
        %v1358 = vadd.f32 0.0, %v1357
        %1359 = vmatmul.f32.gmra.mxu0 %v527
        %v1360 = vpop.f32.mrf.mxu0
        %v1361 = vadd.f32 0.0, %v1360
        %1362 = vmatmul.f32.gmra.mxu0 %v530
        %v1363 = vpop.f32.mrf.mxu0
        %v1364 = vadd.f32 0.0, %v1363
        %1365 = vmatmul.f32.gmra.mxu0 %v533
        %v1366 = vpop.f32.mrf.mxu0
        %v1367 = vadd.f32 0.0, %v1366
        %1368 = vmatmul.f32.gmra.mxu0 %v536
        %v1369 = vpop.f32.mrf.mxu0
        %v1370 = vadd.f32 0.0, %v1369
        %1371 = vmatmul.f32.gmra.mxu0 %v539
        %v1372 = vpop.f32.mrf.mxu0
        %v1373 = vadd.f32 0.0, %v1372
        %1374 = vmatmul.f32.gmra.mxu0 %v542
        %v1375 = vpop.f32.mrf.mxu0
        %v1376 = vadd.f32 0.0, %v1375
        %1377 = vmatmul.f32.gmra.mxu0 %v545
        %v1378 = vpop.f32.mrf.mxu0
        %v1379 = vadd.f32 0.0, %v1378
        %1380 = vmatmul.f32.gmra.mxu0 %v548
        %v1381 = vpop.f32.mrf.mxu0
        %v1382 = vadd.f32 0.0, %v1381
        %1383 = vmatmul.f32.gmra.mxu0 %v551
        %v1384 = vpop.f32.mrf.mxu0
        %v1385 = vadd.f32 0.0, %v1384
        %1386 = vmatmul.f32.gmra.mxu0 %v554
        %v1387 = vpop.f32.mrf.mxu0
        %v1388 = vadd.f32 0.0, %v1387
        %1389 = vmatmul.f32.gmra.mxu0 %v557
        %v1390 = vpop.f32.mrf.mxu0
        %v1391 = vadd.f32 0.0, %v1390
        %1392 = vmatmul.f32.gmra.mxu0 %v560
        %v1393 = vpop.f32.mrf.mxu0
        %v1394 = vadd.f32 0.0, %v1393
        %1395 = vmatmul.f32.gmra.mxu0 %v563
        %v1396 = vpop.f32.mrf.mxu0
        %v1397 = vadd.f32 0.0, %v1396
        %1398 = vmatmul.f32.gmra.mxu0 %v566
        %v1399 = vpop.f32.mrf.mxu0
        %v1400 = vadd.f32 0.0, %v1399
        %1401 = vmatmul.f32.gmra.mxu0 %v569
        %v1402 = vpop.f32.mrf.mxu0
        %v1403 = vadd.f32 0.0, %v1402
        %1404 = vmatmul.f32.gmra.mxu0 %v572
        %v1405 = vpop.f32.mrf.mxu0
        %v1406 = vadd.f32 0.0, %v1405
        %1407 = vmatmul.f32.gmra.mxu0 %v575
        %v1408 = vpop.f32.mrf.mxu0
        %v1409 = vadd.f32 0.0, %v1408
        %1410 = vmatmul.f32.gmra.mxu0 %v578
        %v1411 = vpop.f32.mrf.mxu0
        %v1412 = vadd.f32 0.0, %v1411
        %1413 = vmatmul.f32.gmra.mxu0 %v581
        %v1414 = vpop.f32.mrf.mxu0
        %v1415 = vadd.f32 0.0, %v1414
        %1416 = vmatmul.f32.gmra.mxu0 %v584
        %v1417 = vpop.f32.mrf.mxu0
        %v1418 = vadd.f32 0.0, %v1417
        %1419 = vmatmul.f32.gmra.mxu0 %v587
        %v1420 = vpop.f32.mrf.mxu0
        %v1421 = vadd.f32 0.0, %v1420
        %1422 = vmatmul.f32.gmra.mxu0 %v590
        %v1423 = vpop.f32.mrf.mxu0
        %v1424 = vadd.f32 0.0, %v1423
        %1425 = vmatmul.f32.gmra.mxu0 %v593
        %v1426 = vpop.f32.mrf.mxu0
        %v1427 = vadd.f32 0.0, %v1426
        %1428 = vmatmul.f32.gmra.mxu0 %v596
        %v1429 = vpop.f32.mrf.mxu0
        %v1430 = vadd.f32 0.0, %v1429
        %1431 = vmatmul.f32.gmra.mxu0 %v599
        %v1432 = vpop.f32.mrf.mxu0
        %v1433 = vadd.f32 0.0, %v1432
        %1434 = vdwg.mxu0
        %v1435 = vadd.f32 %v1227, %v1340
        %v1436 = vadd.f32 %v1435, %v1230
        %v1437 = vadd.f32 %v1436, %v1343
        %v1438 = vadd.f32 %v1437, %v1233
        %v1439 = vadd.f32 %v1438, %v1346
        %v1440 = vadd.f32 %v1439, %v1236
        %v1441 = vadd.f32 %v1440, %v1349
        %v1442 = vadd.f32 %v1441, %v1239
        %v1443 = vadd.f32 %v1442, %v1352
        %v1444 = vadd.f32 %v1443, %v1242
        %v1445 = vadd.f32 %v1444, %v1355
        %v1446 = vadd.f32 %v1445, %v1245
        %v1447 = vadd.f32 %v1446, %v1358
        %v1448 = vadd.f32 %v1447, %v1248
        %v1449 = vadd.f32 %v1448, %v1361
        %v1450 = vadd.f32 %v1449, %v1251
        %v1451 = vadd.f32 %v1450, %v1364
        %v1452 = vadd.f32 %v1451, %v1254
        %v1453 = vadd.f32 %v1452, %v1367
        %v1454 = vadd.f32 %v1453, %v1257
        %v1455 = vadd.f32 %v1454, %v1370
        %v1456 = vadd.f32 %v1455, %v1260
        %v1457 = vadd.f32 %v1456, %v1373
        %v1458 = vadd.f32 %v1457, %v1263
        %v1459 = vadd.f32 %v1458, %v1376
        %v1460 = vadd.f32 %v1459, %v1266
        %v1461 = vadd.f32 %v1460, %v1379
        %v1462 = vadd.f32 %v1461, %v1269
        %v1463 = vadd.f32 %v1462, %v1382
        %v1464 = vadd.f32 %v1463, %v1272
        %v1465 = vadd.f32 %v1464, %v1385
        %v1466 = vadd.f32 %v1465, %v1275
        %v1467 = vadd.f32 %v1466, %v1388
        %v1468 = vadd.f32 %v1467, %v1278
        %v1469 = vadd.f32 %v1468, %v1391
        %v1470 = vadd.f32 %v1469, %v1281
        %v1471 = vadd.f32 %v1470, %v1394
        %v1472 = vadd.f32 %v1471, %v1284
        %v1473 = vadd.f32 %v1472, %v1397
        %v1474 = vadd.f32 %v1473, %v1287
        %v1475 = vadd.f32 %v1474, %v1400
        %v1476 = vadd.f32 %v1475, %v1290
        %v1477 = vadd.f32 %v1476, %v1403
        %v1478 = vadd.f32 %v1477, %v1293
        %v1479 = vadd.f32 %v1478, %v1406
        %v1480 = vadd.f32 %v1479, %v1296
        %v1481 = vadd.f32 %v1480, %v1409
        %v1482 = vadd.f32 %v1481, %v1299
        %v1483 = vadd.f32 %v1482, %v1412
        %v1484 = vadd.f32 %v1483, %v1302
        %v1485 = vadd.f32 %v1484, %v1415
        %v1486 = vadd.f32 %v1485, %v1305
        %v1487 = vadd.f32 %v1486, %v1418
        %v1488 = vadd.f32 %v1487, %v1308
        %v1489 = vadd.f32 %v1488, %v1421
        %v1490 = vadd.f32 %v1489, %v1311
        %v1491 = vadd.f32 %v1490, %v1424
        %v1492 = vadd.f32 %v1491, %v1314
        %v1493 = vadd.f32 %v1492, %v1427
        %v1494 = vadd.f32 %v1493, %v1317
        %v1495 = vadd.f32 %v1494, %v1430
        %v1496 = vadd.f32 %v1495, %v1320
        %v1497 = vadd.f32 %v1496, %v1433
        %1498 = vadd.xlane.f32.xlu0 %v1497
        %v1499 = vpop.xlane.xlu0 %1498
        %v1500 = vrot.slane %v1499, 4
        %v1501 = vadd.f32 %v1499, %v1500
        %v1502 = vrot.slane %v1501, 2
        %v1503 = vadd.f32 %v1501, %v1502
        %v1504 = vrot.slane %v1503, 1
        %v1505 = vadd.f32 %v1503, %v1504
        %s1506 = vtos %v1505
        %v1507 = vstv %s1506
        %v1508 = vmul.f32 %v1507, 1.5258789e-05
        %v1509 = vmul.f32 %v1508, %v351
        %v1511 = vrot.slane %v1509, 6
        %v1512 = vrot.slane %v1511, 4
        %v1514 = vadd.f32 %v1208, %v1512
        %v1515 = vld [vmem:[#allocation2] sm:$0xff]
        %v1516 = vld [vmem:[#allocation2 + $0x8] sm:$0xff]
        %v1517 = vld [vmem:[#allocation2 + $0x10] sm:$0xff]
        %v1518 = vld [vmem:[#allocation2 + $0x18] sm:$0xff]
        %v1519 = vld [vmem:[#allocation2 + $0x20] sm:$0xff]
        %v1520 = vld [vmem:[#allocation2 + $0x28] sm:$0xff]
        %v1521 = vld [vmem:[#allocation2 + $0x30] sm:$0xff]
        %v1522 = vld [vmem:[#allocation2 + $0x38] sm:$0xff]
        %v1523 = vld [vmem:[#allocation2 + $0x40] sm:$0xff]
        %v1524 = vld [vmem:[#allocation2 + $0x48] sm:$0xff]
        %v1525 = vld [vmem:[#allocation2 + $0x50] sm:$0xff]
        %v1526 = vld [vmem:[#allocation2 + $0x58] sm:$0xff]
        %v1527 = vld [vmem:[#allocation2 + $0x60] sm:$0xff]
        %v1528 = vld [vmem:[#allocation2 + $0x68] sm:$0xff]
        %v1529 = vld [vmem:[#allocation2 + $0x70] sm:$0xff]
        %v1530 = vld [vmem:[#allocation2 + $0x78] sm:$0xff]
        %v1531 = vld [vmem:[#allocation2 + $0x80] sm:$0xff]
        %v1532 = vld [vmem:[#allocation2 + $0x88] sm:$0xff]
        %v1533 = vld [vmem:[#allocation2 + $0x90] sm:$0xff]
        %v1534 = vld [vmem:[#allocation2 + $0x98] sm:$0xff]
        %v1535 = vld [vmem:[#allocation2 + $0xa0] sm:$0xff]
        %v1536 = vld [vmem:[#allocation2 + $0xa8] sm:$0xff]
        %v1537 = vld [vmem:[#allocation2 + $0xb0] sm:$0xff]
        %v1538 = vld [vmem:[#allocation2 + $0xb8] sm:$0xff]
        %v1539 = vld [vmem:[#allocation2 + $0xc0] sm:$0xff]
        %v1540 = vld [vmem:[#allocation2 + $0xc8] sm:$0xff]
        %v1541 = vld [vmem:[#allocation2 + $0xd0] sm:$0xff]
        %v1542 = vld [vmem:[#allocation2 + $0xd8] sm:$0xff]
        %v1543 = vld [vmem:[#allocation2 + $0xe0] sm:$0xff]
        %v1544 = vld [vmem:[#allocation2 + $0xe8] sm:$0xff]
        %v1545 = vld [vmem:[#allocation2 + $0xf0] sm:$0xff]
        %v1546 = vld [vmem:[#allocation2 + $0xf8] sm:$0xff]
        %v1547 = vld [vmem:[#allocation2 + $0x100] sm:$0xff]
        %v1548 = vld [vmem:[#allocation2 + $0x108] sm:$0xff]
        %v1549 = vld [vmem:[#allocation2 + $0x110] sm:$0xff]
        %v1550 = vld [vmem:[#allocation2 + $0x118] sm:$0xff]
        %v1551 = vld [vmem:[#allocation2 + $0x120] sm:$0xff]
        %v1552 = vld [vmem:[#allocation2 + $0x128] sm:$0xff]
        %v1553 = vld [vmem:[#allocation2 + $0x130] sm:$0xff]
        %v1554 = vld [vmem:[#allocation2 + $0x138] sm:$0xff]
        %v1555 = vld [vmem:[#allocation2 + $0x140] sm:$0xff]
        %v1556 = vld [vmem:[#allocation2 + $0x148] sm:$0xff]
        %v1557 = vld [vmem:[#allocation2 + $0x150] sm:$0xff]
        %v1558 = vld [vmem:[#allocation2 + $0x158] sm:$0xff]
        %v1559 = vld [vmem:[#allocation2 + $0x160] sm:$0xff]
        %v1560 = vld [vmem:[#allocation2 + $0x168] sm:$0xff]
        %v1561 = vld [vmem:[#allocation2 + $0x170] sm:$0xff]
        %v1562 = vld [vmem:[#allocation2 + $0x178] sm:$0xff]
        %v1563 = vld [vmem:[#allocation2 + $0x180] sm:$0xff]
        %v1564 = vld [vmem:[#allocation2 + $0x188] sm:$0xff]
        %v1565 = vld [vmem:[#allocation2 + $0x190] sm:$0xff]
        %v1566 = vld [vmem:[#allocation2 + $0x198] sm:$0xff]
        %v1567 = vld [vmem:[#allocation2 + $0x1a0] sm:$0xff]
        %v1568 = vld [vmem:[#allocation2 + $0x1a8] sm:$0xff]
        %v1569 = vld [vmem:[#allocation2 + $0x1b0] sm:$0xff]
        %v1570 = vld [vmem:[#allocation2 + $0x1b8] sm:$0xff]
        %v1571 = vld [vmem:[#allocation2 + $0x1c0] sm:$0xff]
        %v1572 = vld [vmem:[#allocation2 + $0x1c8] sm:$0xff]
        %v1573 = vld [vmem:[#allocation2 + $0x1d0] sm:$0xff]
        %v1574 = vld [vmem:[#allocation2 + $0x1d8] sm:$0xff]
        %v1575 = vld [vmem:[#allocation2 + $0x1e0] sm:$0xff]
        %v1576 = vld [vmem:[#allocation2 + $0x1e8] sm:$0xff]
        %v1577 = vld [vmem:[#allocation2 + $0x1f0] sm:$0xff]
        %v1578 = vld [vmem:[#allocation2 + $0x1f8] sm:$0xff]
        %v1579 = vld [vmem:[%s5] sm:$0x3]
        %v1581 = vperm.slane %v1514, 0
        %v1582 = vperm.slane %v1514, 4
        %v1586 = vperm.slane %v1579, 0
        %v1587 = vperm.slane %v1579, 1
        %1590 = vmatpush.msra.mxu0 %v1545
        %1591 = vmatpush.msra.mxu0 %v1543
        %1592 = vmatpush.msra.mxu0 %v1541
        %1593 = vmatpush.msra.mxu0 %v1539
        %1594 = vmatpush.msra.mxu0 %v1537
        %1595 = vmatpush.msra.mxu0 %v1535
        %1596 = vmatpush.msra.mxu0 %v1533
        %1597 = vmatpush.msra.mxu0 %v1531
        %1598 = vmatpush.msra.mxu0 %v1529
        %1599 = vmatpush.msra.mxu0 %v1527
        %1600 = vmatpush.msra.mxu0 %v1525
        %1601 = vmatpush.msra.mxu0 %v1523
        %1602 = vmatpush.msra.mxu0 %v1521
        %1603 = vmatpush.msra.mxu0 %v1519
        %1604 = vmatpush.msra.mxu0 %v1517
        %1605 = vmatpush.msra.mxu0 %v1515
        %1606 = vmatmul.f32.gmra.mxu0 %v1581
        %v1607 = vpop.f32.mrf.mxu0
        %v1608 = vadd.f32 %v1586, %v1607
        %1609 = vdwg.mxu0
        %1610 = vmatpush.msra.mxu0 %v1577
        %1611 = vmatpush.msra.mxu0 %v1575
        %1612 = vmatpush.msra.mxu0 %v1573
        %1613 = vmatpush.msra.mxu0 %v1571
        %1614 = vmatpush.msra.mxu0 %v1569
        %1615 = vmatpush.msra.mxu0 %v1567
        %1616 = vmatpush.msra.mxu0 %v1565
        %1617 = vmatpush.msra.mxu0 %v1563
        %1618 = vmatpush.msra.mxu0 %v1561
        %1619 = vmatpush.msra.mxu0 %v1559
        %1620 = vmatpush.msra.mxu0 %v1557
        %1621 = vmatpush.msra.mxu0 %v1555
        %1622 = vmatpush.msra.mxu0 %v1553
        %1623 = vmatpush.msra.mxu0 %v1551
        %1624 = vmatpush.msra.mxu0 %v1549
        %1625 = vmatpush.msra.mxu0 %v1547
        %1626 = vmatmul.f32.gmra.mxu0 %v1582
        %v1627 = vpop.f32.mrf.mxu0
        %v1628 = vadd.f32 %v1608, %v1627
        %1629 = vdwg.mxu0
        %1630 = vmatpush.msra.mxu0 %v1546
        %1631 = vmatpush.msra.mxu0 %v1544
        %1632 = vmatpush.msra.mxu0 %v1542
        %1633 = vmatpush.msra.mxu0 %v1540
        %1634 = vmatpush.msra.mxu0 %v1538
        %1635 = vmatpush.msra.mxu0 %v1536
        %1636 = vmatpush.msra.mxu0 %v1534
        %1637 = vmatpush.msra.mxu0 %v1532
        %1638 = vmatpush.msra.mxu0 %v1530
        %1639 = vmatpush.msra.mxu0 %v1528
        %1640 = vmatpush.msra.mxu0 %v1526
        %1641 = vmatpush.msra.mxu0 %v1524
        %1642 = vmatpush.msra.mxu0 %v1522
        %1643 = vmatpush.msra.mxu0 %v1520
        %1644 = vmatpush.msra.mxu0 %v1518
        %1645 = vmatpush.msra.mxu0 %v1516
        %1646 = vmatmul.f32.gmra.mxu0 %v1581
        %v1647 = vpop.f32.mrf.mxu0
        %v1648 = vadd.f32 %v1587, %v1647
        %1649 = vdwg.mxu0
        %1650 = vmatpush.msra.mxu0 %v1578
        %1651 = vmatpush.msra.mxu0 %v1576
        %1652 = vmatpush.msra.mxu0 %v1574
        %1653 = vmatpush.msra.mxu0 %v1572
        %1654 = vmatpush.msra.mxu0 %v1570
        %1655 = vmatpush.msra.mxu0 %v1568
        %1656 = vmatpush.msra.mxu0 %v1566
        %1657 = vmatpush.msra.mxu0 %v1564
        %1658 = vmatpush.msra.mxu0 %v1562
        %1659 = vmatpush.msra.mxu0 %v1560
        %1660 = vmatpush.msra.mxu0 %v1558
        %1661 = vmatpush.msra.mxu0 %v1556
        %1662 = vmatpush.msra.mxu0 %v1554
        %1663 = vmatpush.msra.mxu0 %v1552
        %1664 = vmatpush.msra.mxu0 %v1550
        %1665 = vmatpush.msra.mxu0 %v1548
        %1666 = vmatmul.f32.gmra.mxu0 %v1582
        %v1667 = vpop.f32.mrf.mxu0
        %v1668 = vadd.f32 %v1648, %v1667
        %1669 = vdwg.mxu0
        %v1670 = vmax.f32 %v1628, 0.0
        %v1671 = vmax.f32 %v1668, 0.0
        %v1672 = vld [vmem:[#allocation5] sm:$0xff]
        %v1673 = vld [vmem:[#allocation5 + $0x8] sm:$0xff]
        %v1674 = vld [vmem:[#allocation5 + $0x10] sm:$0xff]
        %v1675 = vld [vmem:[#allocation5 + $0x18] sm:$0xff]
        %v1676 = vld [vmem:[#allocation5 + $0x20] sm:$0xff]
        %v1677 = vld [vmem:[#allocation5 + $0x28] sm:$0xff]
        %v1678 = vld [vmem:[#allocation5 + $0x30] sm:$0xff]
        %v1679 = vld [vmem:[#allocation5 + $0x38] sm:$0xff]
        %v1680 = vld [vmem:[#allocation5 + $0x40] sm:$0xff]
        %v1681 = vld [vmem:[#allocation5 + $0x48] sm:$0xff]
        %v1682 = vld [vmem:[#allocation5 + $0x50] sm:$0xff]
        %v1683 = vld [vmem:[#allocation5 + $0x58] sm:$0xff]
        %v1684 = vld [vmem:[#allocation5 + $0x60] sm:$0xff]
        %v1685 = vld [vmem:[#allocation5 + $0x68] sm:$0xff]
        %v1686 = vld [vmem:[#allocation5 + $0x70] sm:$0xff]
        %v1687 = vld [vmem:[#allocation5 + $0x78] sm:$0xff]
        %v1688 = vld [vmem:[#allocation5 + $0x80] sm:$0xff]
        %v1689 = vld [vmem:[#allocation5 + $0x88] sm:$0xff]
        %v1690 = vld [vmem:[#allocation5 + $0x90] sm:$0xff]
        %v1691 = vld [vmem:[#allocation5 + $0x98] sm:$0xff]
        %v1692 = vld [vmem:[#allocation5 + $0xa0] sm:$0xff]
        %v1693 = vld [vmem:[#allocation5 + $0xa8] sm:$0xff]
        %v1694 = vld [vmem:[#allocation5 + $0xb0] sm:$0xff]
        %v1695 = vld [vmem:[#allocation5 + $0xb8] sm:$0xff]
        %v1696 = vld [vmem:[#allocation5 + $0xc0] sm:$0xff]
        %v1697 = vld [vmem:[#allocation5 + $0xc8] sm:$0xff]
        %v1698 = vld [vmem:[#allocation5 + $0xd0] sm:$0xff]
        %v1699 = vld [vmem:[#allocation5 + $0xd8] sm:$0xff]
        %v1700 = vld [vmem:[#allocation5 + $0xe0] sm:$0xff]
        %v1701 = vld [vmem:[#allocation5 + $0xe8] sm:$0xff]
        %v1702 = vld [vmem:[#allocation5 + $0xf0] sm:$0xff]
        %v1703 = vld [vmem:[#allocation5 + $0xf8] sm:$0xff]
        %v1704 = vld [vmem:[%s7] sm:$0x1]
        %1705 = vmatpush.msra.mxu0 %v1687
        %1706 = vmatpush.msra.mxu0 %v1686
        %1707 = vmatpush.msra.mxu0 %v1685
        %1708 = vmatpush.msra.mxu0 %v1684
        %1709 = vmatpush.msra.mxu0 %v1683
        %1710 = vmatpush.msra.mxu0 %v1682
        %1711 = vmatpush.msra.mxu0 %v1681
        %1712 = vmatpush.msra.mxu0 %v1680
        %1713 = vmatpush.msra.mxu0 %v1679
        %1714 = vmatpush.msra.mxu0 %v1678
        %1715 = vmatpush.msra.mxu0 %v1677
        %1716 = vmatpush.msra.mxu0 %v1676
        %1717 = vmatpush.msra.mxu0 %v1675
        %1718 = vmatpush.msra.mxu0 %v1674
        %1719 = vmatpush.msra.mxu0 %v1673
        %1720 = vmatpush.msra.mxu0 %v1672
        %1721 = vmatmul.f32.gmra.mxu0 %v1670
        %v1722 = vpop.f32.mrf.mxu0
        %v1723 = vadd.f32 %v1704, %v1722
        %1724 = vdwg.mxu0
        %1725 = vmatpush.msra.mxu0 %v1703
        %1726 = vmatpush.msra.mxu0 %v1702
        %1727 = vmatpush.msra.mxu0 %v1701
        %1728 = vmatpush.msra.mxu0 %v1700
        %1729 = vmatpush.msra.mxu0 %v1699
        %1730 = vmatpush.msra.mxu0 %v1698
        %1731 = vmatpush.msra.mxu0 %v1697
        %1732 = vmatpush.msra.mxu0 %v1696
        %1733 = vmatpush.msra.mxu0 %v1695
        %1734 = vmatpush.msra.mxu0 %v1694
        %1735 = vmatpush.msra.mxu0 %v1693
        %1736 = vmatpush.msra.mxu0 %v1692
        %1737 = vmatpush.msra.mxu0 %v1691
        %1738 = vmatpush.msra.mxu0 %v1690
        %1739 = vmatpush.msra.mxu0 %v1689
        %1740 = vmatpush.msra.mxu0 %v1688
        %1741 = vmatmul.f32.gmra.mxu0 %v1671
        %v1742 = vpop.f32.mrf.mxu0
        %v1743 = vadd.f32 %v1723, %v1742
        %1744 = vdwg.mxu0
        %1745 = vst [vmem:[%s331] sm:$0x1] %v1743
        %s1746 = sand.u32 %s205, 1
        %s1747 = scalar_lea.sflag [#allocation4], %s1746
        %s1748 = sand.u32 %s205, 1
        %s1749 = scalar_lea.vmem [#allocation7], %s1748
        // Predicated region
        $region61: #{tpu_custom_call.1} parent=51 // pred_check
          %p1750 = pneg %p215
        $region62: #{tpu_custom_call.1} parent=51 // pred_check_branch
          %1752 = sbr.rel (%p1750) target = $region64
        $region63: #{tpu_custom_call.1} parent=51 // pred_region
          %1754 = vsyncadd %s1747, 0
          %s1755 = scalar_lea.hbm %s8, %s24
          %s1757 = sshll.u32 %s1749, 4
          %s1758 = int_to_ptr.vmem [resolvable:$true] %s1757
          %s1759 = sshll.u32 %s1755, 4
          %s1760 = int_to_ptr.hbm [resolvable:$true] %s1759
          %1762 = dma.vmem_to_hbm [thread:$0]  %s1758, 16, %s1760, %s1747
        $region64: #{tpu_custom_call.1} parent=51 // pred_fallthru
          _
      $region52: #{tpu_custom_call.1} parent=5 // pred_fallthru
        _
      %p1763 = scmp.le.s32.totalorder 2, %s19
      // Predicated region
      $region65: #{tpu_custom_call.1} parent=5 // pred_check
        %p1764 = pneg %p1763
      $region66: #{tpu_custom_call.1} parent=5 // pred_check_branch
        %1766 = sbr.rel (%p1764) target = $region68
      $region67: #{tpu_custom_call.1} parent=5 // pred_region
        %s1767 = ssub.s32 %s19, 2
        // Predicated region
        $region69: #{tpu_custom_call.1} parent=67 // pred_check
          %p1768 = pneg %p221
        $region70: #{tpu_custom_call.1} parent=67 // pred_check_branch
          %1770 = sbr.rel (%p1768) target = $region72
        $region71: #{tpu_custom_call.1} parent=67 // pred_region
          %s1771 = sand.u32 %s206, 1
          %s1772 = scalar_lea.sflag [#allocation4], %s1771
          %s1773 = sand.u32 %s206, 1
          %s1774 = scalar_lea.vmem [#allocation7], %s1773
          %1776 = dma.done %s1772, 16
        $region72: #{tpu_custom_call.1} parent=67 // pred_fallthru
          _
      $region68: #{tpu_custom_call.1} parent=5 // pred_fallthru
        _
    $region6: #{tpu_custom_call.1} parent=1 // loop_footer
      %s23 = sadd.s32 1, %s19
    $region7: #{tpu_custom_call.1} parent=1 // loop_footer_branch
      %18 = sbr.rel target = $region3
    $region8: #{tpu_custom_call.1} parent=1 // loop_exit
      _
    %1777 = vsyncpa [#allocation3], 1
    %s1778 = scalar_lea.sflag [#allocation3], 1
    %1779 = vsyncpa %s1778, 1
    %1780 = vsyncpa [#allocation6], 1
    %1781 = vsyncpa [#allocation4], 1
    %s1782 = scalar_lea.sflag [#allocation4], 1
    %1783 = vsyncpa %s1782, 1

</llo_original>
